<compile_context>
chip_gen: v6e
topology: v6e:2x2x1
jax: 0.10.0
libtpu: 0.0.40
codegen_flags: <defaults>
</compile_context>

<pallas_src>
import functools

import numpy as np

import jax
import jax.numpy as jnp
from jax.experimental import pallas as pl
from jax.experimental.pallas import tpu as pltpu


def _conv_down_kernel(x_ref, w_ref, b_ref, o_ref, *, taps, n_lanes):
    # x_ref : (1, 4, Cin, Lin)       4 stride-2 phase planes, spatial flattened
    # w_ref : (T, tc, Cin)           fused (k+1)x(k+1) stride-2 weights per tap
    # b_ref : (tc, 1)                bias (f32)
    # o_ref : (1, tc, n_lanes)       pooled output block (lane-padded)
    tc = o_ref.shape[1]

    # Seed the accumulator with the broadcast bias (avg-pool of a constant is
    # the constant, so bias passes through the fused conv unchanged).
    acc = jnp.broadcast_to(b_ref[...].astype(jnp.float32), (tc, n_lanes))

    # One MXU matmul per fused-conv tap; every tap reads a contiguous
    # lane-offset slice of one phase plane (static offsets, no relayouts).
    for t, ph, off in taps:
        x_t = x_ref[0, ph, :, pl.ds(off, n_lanes)]           # (Cin, n_lanes)
        acc = acc + jnp.dot(w_ref[t], x_t,
                            preferred_element_type=jnp.float32)

    o_ref[0] = acc.astype(o_ref.dtype)                       # single store


def conv_down_pallas(x_nchw, w_oihw, bias, *, compute_dtype=jnp.bfloat16):
    """Conv2d (k=1 valid / k=3 same, stride 1, bias) + AvgPool2d(2), NCHW."""
    B, Cin, H, W = x_nchw.shape
    Cout, Cin_w, kH, kW = w_oihw.shape
    assert Cin == Cin_w and kH == kW and kH in (1, 3)
    k = kH
    pad = (k - 1) // 2
    Ho, Wo = H // 2, W // 2                 # AvgPool2d(2) floors odd sizes
    K2 = k + 1                              # fused stride-2 kernel size
    T = K2 * K2                             # number of fused taps (4 or 16)
    ext = K2 // 2 - 1                       # halo rows/cols in the phase planes
    Hph, Wph = Ho + ext, Wo + ext           # phase-plane dims actually needed
    Lout = Ho * Wph                         # valid flattened output columns
    Lout_pad = ((Lout + 127) // 128) * 128  # lane-dense output width
    max_off = ext * Wph + ext               # largest static tap offset
    Lin = max_off + Lout_pad                # flat phase-plane length (padded)

    out_dtype = x_nchw.dtype
    cbytes = jnp.dtype(compute_dtype).itemsize
    obytes = jnp.dtype(out_dtype).itemsize

    # ---- activations: pad, split into 4 stride-2 phase planes, flatten ----
    xp = x_nchw
    if pad:
        xp = jnp.pad(xp, ((0, 0), (0, 0), (pad, pad), (pad, pad)))
    phases = []
    for up in range(2):
        for vp in range(2):
            phases.append(xp[:, :, up::2, vp::2][:, :, :Hph, :Wph])
    xph = jnp.stack(phases, axis=1).reshape(B, 4, Cin, Hph * Wph)
    tail = Lin - Hph * Wph
    if tail:
        xph = jnp.pad(xph, ((0, 0), (0, 0), (0, 0), (0, tail)))
    xph = xph.astype(compute_dtype)

    # ---- fused weights: (k x k conv) o (2x2 avg) == (k+1)x(k+1) stride-2 ----
    # A[u, ky] = 1 iff ky + dy == u for some dy in {0,1}
    A = np.zeros((K2, k), np.float32)
    for u in range(K2):
        for ky in range(k):
            if 0 <= u - ky <= 1:
                A[u, ky] = 1.0
    wf = 0.25 * jnp.einsum('uy,vx,oiyx->uvoi', A, A,
                           w_oihw.astype(jnp.float32))
    wf = wf.reshape(T, Cout, Cin).astype(compute_dtype)
    b2 = bias.reshape(Cout, 1).astype(jnp.float32)

    # Tap metadata: (tap index, phase index, static lane offset).
    taps = tuple((u * K2 + v, (u % 2) * 2 + (v % 2), (u // 2) * Wph + (v // 2))
                 for u in range(K2) for v in range(K2))

    # ---- Cout tiling (second parallel axis; helps v7x when B is small) ----
    tc = Cout
    for cand in (256, 128):
        if Cout > cand and Cout % cand == 0:
            tc = cand
            break
    n_ct = Cout // tc

    # ---- VMEM budget + cost hint ----
    block_bytes = (2 * 4 * Cin * Lin * cbytes      # x block (double-buffered)
                   + 2 * T * tc * Cin * cbytes     # w block
                   + 2 * tc * 4                    # bias block
                   + 2 * tc * Lout_pad * obytes    # out block
                   + tc * Lout_pad * 4)            # f32 accumulator
    vmem_limit = int(min(max(block_bytes * 2, 32 * 1024 * 1024),
                         100 * 1024 * 1024))
    cost = pl.CostEstimate(
        flops=int(2 * B * T * Cout * Cin * Lout_pad),
        transcendentals=0,
        bytes_accessed=int(xph.size * cbytes + wf.size * cbytes + b2.size * 4
                           + B * Cout * Lout_pad * obytes))

    out_flat = pl.pallas_call(
        functools.partial(_conv_down_kernel, taps=taps, n_lanes=Lout_pad),
        out_shape=jax.ShapeDtypeStruct((B, Cout, Lout_pad), out_dtype),
        grid=(B, n_ct),
        in_specs=[
            pl.BlockSpec((1, 4, Cin, Lin), lambda b, j: (b, 0, 0, 0)),
            pl.BlockSpec((T, tc, Cin), lambda b, j: (0, j, 0)),
            pl.BlockSpec((tc, 1), lambda b, j: (j, 0)),
        ],
        out_specs=pl.BlockSpec((1, tc, Lout_pad), lambda b, j: (b, j, 0)),
        compiler_params=pltpu.CompilerParams(
            dimension_semantics=("parallel", "parallel"),
            vmem_limit_bytes=vmem_limit),
        cost_estimate=cost,
    )(xph, wf, b2)

    # Crop the lane padding and (for k=3) the extra halo column per row.
    out = out_flat[:, :, :Lout].reshape(B, Cout, Ho, Wph)[:, :, :, :Wo]
    return out


class ConvDownPallas:
    """Mirror of the PyTorch `ConvDown` module (forward only)."""

    def __init__(self, in_channels, out_channels, kernel_size,
                 bias=True, he_init=True, key=None):
        assert kernel_size in (1, 3)
        self.he_init = he_init  # stored, unused in forward (as in reference)
        if key is None:
            key = jax.random.PRNGKey(0)
        k_w, k_b = jax.random.split(key)
        fan_in = in_channels * kernel_size * kernel_size
        bound = 1.0 / (fan_in ** 0.5)   # torch Conv2d default init bounds
        self.weight = jax.random.uniform(
            k_w, (out_channels, in_channels, kernel_size, kernel_size),
            dtype=jnp.float32, minval=-bound, maxval=bound)
        if bias:
            self.bias = jax.random.uniform(
                k_b, (out_channels,), dtype=jnp.float32,
                minval=-bound, maxval=bound)
        else:
            self.bias = jnp.zeros((out_channels,), jnp.float32)

    def __call__(self, x_nchw, compute_dtype=jnp.bfloat16):
        return conv_down_pallas(x_nchw, self.weight, self.bias,
                                compute_dtype=compute_dtype)


def _reference_conv_down(x_nchw, w_oihw, bias, pad):
    conv = jax.lax.conv_general_dilated(
        x_nchw, w_oihw, window_strides=(1, 1),
        padding=[(pad, pad), (pad, pad)],
        dimension_numbers=("NCHW", "OIHW", "NCHW"))
    conv = conv + bias.reshape(1, -1, 1, 1)
    B, C, H, W = conv.shape
    return conv.reshape(B, C, H // 2, 2, W // 2, 2).mean(axis=(3, 5))


if __name__ == "__main__":
    key = jax.random.PRNGKey(0)
    kx, kmod3, kmod1 = jax.random.split(key, 3)

    B, Cin, H, W = 2, 4, 16, 16
    Cout = 8
    x = jax.random.normal(kx, (B, Cin, H, W), dtype=jnp.float32)

    mod3 = ConvDownPallas(Cin, Cout, 3, bias=True, key=kmod3)
    mod1 = ConvDownPallas(Cin, Cout, 1, bias=True, key=kmod1)

    # kernel_size = 3 path (conv padding=1, then 2x2 avg pool) -- exact f32 path
    y3 = jax.block_until_ready(
        conv_down_pallas(x, mod3.weight, mod3.bias, compute_dtype=jnp.float32))
    ref3 = _reference_conv_down(x, mod3.weight, mod3.bias, pad=1)
    assert y3.shape == (B, Cout, H // 2, W // 2)
    assert jnp.allclose(y3, ref3, atol=2e-4, rtol=2e-4)

    # kernel_size = 1 path (no padding, then 2x2 avg pool) -- exact f32 path
    y1 = jax.block_until_ready(
        conv_down_pallas(x, mod1.weight, mod1.bias, compute_dtype=jnp.float32))
    ref1 = _reference_conv_down(x, mod1.weight, mod1.bias, pad=0)
    assert y1.shape == (B, Cout, H // 2, W // 2)
    assert jnp.allclose(y1, ref1, atol=2e-4, rtol=2e-4)

    # Default bf16 compute path (module __call__); f32 accumulation on the MXU.
    y3_bf16 = jax.block_until_ready(mod3(x))
    assert y3_bf16.shape == (B, Cout, H // 2, W // 2)
    assert jnp.allclose(y3_bf16, ref3, atol=5e-2, rtol=5e-2)

    print("KERNEL_OK")
</pallas_src>

<mosaic_0001>
module attributes {stable_mosaic.version = 11 : i64} {
  func.func @_conv_down_kernel(%arg0: i32, %arg1: i32, %arg2: memref<1x4x4x138xf32, #tpu.memory_space<vmem>>, %arg3: memref<16x8x4xf32, #tpu.memory_space<vmem>>, %arg4: memref<8x1xf32, #tpu.memory_space<vmem>>, %arg5: memref<1x8x128xf32, #tpu.memory_space<vmem>>) attributes {dimension_semantics = [#tpu.dimension_semantics<parallel>, #tpu.dimension_semantics<parallel>], iteration_bounds = array<i64: 2, 1>, scalar_prefetch = 0 : i64, scratch_operands = 0 : i64, tpu.core_type = #tpu.core_type<tc>, window_params = [{transform_indices = @transform_0, window_bounds = array<i64: 1, 4, 4, 138>}, {transform_indices = @transform_1, window_bounds = array<i64: 16, 8, 4>}, {transform_indices = @transform_2, window_bounds = array<i64: 8, 1>}, {transform_indices = @transform_3, window_bounds = array<i64: 1, 8, 128>}]} {
    %c0 = arith.constant 0 : index
    %c0_0 = arith.constant 0 : index
    %0 = vector.load %arg4[%c0, %c0_0] : memref<8x1xf32, #tpu.memory_space<vmem>>, vector<8x1xf32>
    %1 = vector.shape_cast %0 : vector<8x1xf32> to vector<8x1xf32>
    %2 = vector.broadcast %1 : vector<8x1xf32> to vector<8x128xf32>
    %c0_1 = arith.constant 0 : index
    %c0_2 = arith.constant 0 : index
    %c0_3 = arith.constant 0 : index
    %c0_4 = arith.constant 0 : index
    %3 = vector.load %arg2[%c0_1, %c0_2, %c0_3, %c0_4] : memref<1x4x4x138xf32, #tpu.memory_space<vmem>>, vector<1x1x4x128xf32>
    %4 = vector.shape_cast %3 : vector<1x1x4x128xf32> to vector<4x128xf32>
    %c0_5 = arith.constant 0 : index
    %c0_6 = arith.constant 0 : index
    %c0_7 = arith.constant 0 : index
    %5 = vector.load %arg3[%c0_5, %c0_6, %c0_7] : memref<16x8x4xf32, #tpu.memory_space<vmem>>, vector<1x8x4xf32>
    %6 = vector.shape_cast %5 : vector<1x8x4xf32> to vector<8x4xf32>
    %cst = arith.constant dense<0.000000e+00> : vector<8x128xf32>
    %7 = tpu.matmul %6, %4, %cst {dimension_numbers = #tpu.dot_dimension_numbers<[1], [0], [0], [1], [0, 0, 1, 1], [], []>} : vector<8x4xf32>, vector<4x128xf32>, vector<8x128xf32> -> vector<8x128xf32>
    %8 = arith.addf %2, %7 : vector<8x128xf32>
    %c0_8 = arith.constant 0 : index
    %c1 = arith.constant 1 : index
    %c0_9 = arith.constant 0 : index
    %c0_10 = arith.constant 0 : index
    %9 = vector.load %arg2[%c0_8, %c1, %c0_9, %c0_10] : memref<1x4x4x138xf32, #tpu.memory_space<vmem>>, vector<1x1x4x128xf32>
    %10 = vector.shape_cast %9 : vector<1x1x4x128xf32> to vector<4x128xf32>
    %c1_11 = arith.constant 1 : index
    %c0_12 = arith.constant 0 : index
    %c0_13 = arith.constant 0 : index
    %11 = vector.load %arg3[%c1_11, %c0_12, %c0_13] : memref<16x8x4xf32, #tpu.memory_space<vmem>>, vector<1x8x4xf32>
    %12 = vector.shape_cast %11 : vector<1x8x4xf32> to vector<8x4xf32>
    %cst_14 = arith.constant dense<0.000000e+00> : vector<8x128xf32>
    %13 = tpu.matmul %12, %10, %cst_14 {dimension_numbers = #tpu.dot_dimension_numbers<[1], [0], [0], [1], [0, 0, 1, 1], [], []>} : vector<8x4xf32>, vector<4x128xf32>, vector<8x128xf32> -> vector<8x128xf32>
    %14 = arith.addf %8, %13 : vector<8x128xf32>
    %c0_15 = arith.constant 0 : index
    %c0_16 = arith.constant 0 : index
    %c0_17 = arith.constant 0 : index
    %c1_18 = arith.constant 1 : index
    %15 = vector.load %arg2[%c0_15, %c0_16, %c0_17, %c1_18] : memref<1x4x4x138xf32, #tpu.memory_space<vmem>>, vector<1x1x4x128xf32>
    %16 = vector.shape_cast %15 : vector<1x1x4x128xf32> to vector<4x128xf32>
    %c2 = arith.constant 2 : index
    %c0_19 = arith.constant 0 : index
    %c0_20 = arith.constant 0 : index
    %17 = vector.load %arg3[%c2, %c0_19, %c0_20] : memref<16x8x4xf32, #tpu.memory_space<vmem>>, vector<1x8x4xf32>
    %18 = vector.shape_cast %17 : vector<1x8x4xf32> to vector<8x4xf32>
    %cst_21 = arith.constant dense<0.000000e+00> : vector<8x128xf32>
    %19 = tpu.matmul %18, %16, %cst_21 {dimension_numbers = #tpu.dot_dimension_numbers<[1], [0], [0], [1], [0, 0, 1, 1], [], []>} : vector<8x4xf32>, vector<4x128xf32>, vector<8x128xf32> -> vector<8x128xf32>
    %20 = arith.addf %14, %19 : vector<8x128xf32>
    %c0_22 = arith.constant 0 : index
    %c1_23 = arith.constant 1 : index
    %c0_24 = arith.constant 0 : index
    %c1_25 = arith.constant 1 : index
    %21 = vector.load %arg2[%c0_22, %c1_23, %c0_24, %c1_25] : memref<1x4x4x138xf32, #tpu.memory_space<vmem>>, vector<1x1x4x128xf32>
    %22 = vector.shape_cast %21 : vector<1x1x4x128xf32> to vector<4x128xf32>
    %c3 = arith.constant 3 : index
    %c0_26 = arith.constant 0 : index
    %c0_27 = arith.constant 0 : index
    %23 = vector.load %arg3[%c3, %c0_26, %c0_27] : memref<16x8x4xf32, #tpu.memory_space<vmem>>, vector<1x8x4xf32>
    %24 = vector.shape_cast %23 : vector<1x8x4xf32> to vector<8x4xf32>
    %cst_28 = arith.constant dense<0.000000e+00> : vector<8x128xf32>
    %25 = tpu.matmul %24, %22, %cst_28 {dimension_numbers = #tpu.dot_dimension_numbers<[1], [0], [0], [1], [0, 0, 1, 1], [], []>} : vector<8x4xf32>, vector<4x128xf32>, vector<8x128xf32> -> vector<8x128xf32>
    %26 = arith.addf %20, %25 : vector<8x128xf32>
    %c0_29 = arith.constant 0 : index
    %c2_30 = arith.constant 2 : index
    %c0_31 = arith.constant 0 : index
    %c0_32 = arith.constant 0 : index
    %27 = vector.load %arg2[%c0_29, %c2_30, %c0_31, %c0_32] : memref<1x4x4x138xf32, #tpu.memory_space<vmem>>, vector<1x1x4x128xf32>
    %28 = vector.shape_cast %27 : vector<1x1x4x128xf32> to vector<4x128xf32>
    %c4 = arith.constant 4 : index
    %c0_33 = arith.constant 0 : index
    %c0_34 = arith.constant 0 : index
    %29 = vector.load %arg3[%c4, %c0_33, %c0_34] : memref<16x8x4xf32, #tpu.memory_space<vmem>>, vector<1x8x4xf32>
    %30 = vector.shape_cast %29 : vector<1x8x4xf32> to vector<8x4xf32>
    %cst_35 = arith.constant dense<0.000000e+00> : vector<8x128xf32>
    %31 = tpu.matmul %30, %28, %cst_35 {dimension_numbers = #tpu.dot_dimension_numbers<[1], [0], [0], [1], [0, 0, 1, 1], [], []>} : vector<8x4xf32>, vector<4x128xf32>, vector<8x128xf32> -> vector<8x128xf32>
    %32 = arith.addf %26, %31 : vector<8x128xf32>
    %c0_36 = arith.constant 0 : index
    %c3_37 = arith.constant 3 : index
    %c0_38 = arith.constant 0 : index
    %c0_39 = arith.constant 0 : index
    %33 = vector.load %arg2[%c0_36, %c3_37, %c0_38, %c0_39] : memref<1x4x4x138xf32, #tpu.memory_space<vmem>>, vector<1x1x4x128xf32>
    %34 = vector.shape_cast %33 : vector<1x1x4x128xf32> to vector<4x128xf32>
    %c5 = arith.constant 5 : index
    %c0_40 = arith.constant 0 : index
    %c0_41 = arith.constant 0 : index
    %35 = vector.load %arg3[%c5, %c0_40, %c0_41] : memref<16x8x4xf32, #tpu.memory_space<vmem>>, vector<1x8x4xf32>
    %36 = vector.shape_cast %35 : vector<1x8x4xf32> to vector<8x4xf32>
    %cst_42 = arith.constant dense<0.000000e+00> : vector<8x128xf32>
    %37 = tpu.matmul %36, %34, %cst_42 {dimension_numbers = #tpu.dot_dimension_numbers<[1], [0], [0], [1], [0, 0, 1, 1], [], []>} : vector<8x4xf32>, vector<4x128xf32>, vector<8x128xf32> -> vector<8x128xf32>
    %38 = arith.addf %32, %37 : vector<8x128xf32>
    %c0_43 = arith.constant 0 : index
    %c2_44 = arith.constant 2 : index
    %c0_45 = arith.constant 0 : index
    %c1_46 = arith.constant 1 : index
    %39 = vector.load %arg2[%c0_43, %c2_44, %c0_45, %c1_46] : memref<1x4x4x138xf32, #tpu.memory_space<vmem>>, vector<1x1x4x128xf32>
    %40 = vector.shape_cast %39 : vector<1x1x4x128xf32> to vector<4x128xf32>
    %c6 = arith.constant 6 : index
    %c0_47 = arith.constant 0 : index
    %c0_48 = arith.constant 0 : index
    %41 = vector.load %arg3[%c6, %c0_47, %c0_48] : memref<16x8x4xf32, #tpu.memory_space<vmem>>, vector<1x8x4xf32>
    %42 = vector.shape_cast %41 : vector<1x8x4xf32> to vector<8x4xf32>
    %cst_49 = arith.constant dense<0.000000e+00> : vector<8x128xf32>
    %43 = tpu.matmul %42, %40, %cst_49 {dimension_numbers = #tpu.dot_dimension_numbers<[1], [0], [0], [1], [0, 0, 1, 1], [], []>} : vector<8x4xf32>, vector<4x128xf32>, vector<8x128xf32> -> vector<8x128xf32>
    %44 = arith.addf %38, %43 : vector<8x128xf32>
    %c0_50 = arith.constant 0 : index
    %c3_51 = arith.constant 3 : index
    %c0_52 = arith.constant 0 : index
    %c1_53 = arith.constant 1 : index
    %45 = vector.load %arg2[%c0_50, %c3_51, %c0_52, %c1_53] : memref<1x4x4x138xf32, #tpu.memory_space<vmem>>, vector<1x1x4x128xf32>
    %46 = vector.shape_cast %45 : vector<1x1x4x128xf32> to vector<4x128xf32>
    %c7 = arith.constant 7 : index
    %c0_54 = arith.constant 0 : index
    %c0_55 = arith.constant 0 : index
    %47 = vector.load %arg3[%c7, %c0_54, %c0_55] : memref<16x8x4xf32, #tpu.memory_space<vmem>>, vector<1x8x4xf32>
    %48 = vector.shape_cast %47 : vector<1x8x4xf32> to vector<8x4xf32>
    %cst_56 = arith.constant dense<0.000000e+00> : vector<8x128xf32>
    %49 = tpu.matmul %48, %46, %cst_56 {dimension_numbers = #tpu.dot_dimension_numbers<[1], [0], [0], [1], [0, 0, 1, 1], [], []>} : vector<8x4xf32>, vector<4x128xf32>, vector<8x128xf32> -> vector<8x128xf32>
    %50 = arith.addf %44, %49 : vector<8x128xf32>
    %c0_57 = arith.constant 0 : index
    %c0_58 = arith.constant 0 : index
    %c0_59 = arith.constant 0 : index
    %c9 = arith.constant 9 : index
    %51 = vector.load %arg2[%c0_57, %c0_58, %c0_59, %c9] : memref<1x4x4x138xf32, #tpu.memory_space<vmem>>, vector<1x1x4x128xf32>
    %52 = vector.shape_cast %51 : vector<1x1x4x128xf32> to vector<4x128xf32>
    %c8 = arith.constant 8 : index
    %c0_60 = arith.constant 0 : index
    %c0_61 = arith.constant 0 : index
    %53 = vector.load %arg3[%c8, %c0_60, %c0_61] : memref<16x8x4xf32, #tpu.memory_space<vmem>>, vector<1x8x4xf32>
    %54 = vector.shape_cast %53 : vector<1x8x4xf32> to vector<8x4xf32>
    %cst_62 = arith.constant dense<0.000000e+00> : vector<8x128xf32>
    %55 = tpu.matmul %54, %52, %cst_62 {dimension_numbers = #tpu.dot_dimension_numbers<[1], [0], [0], [1], [0, 0, 1, 1], [], []>} : vector<8x4xf32>, vector<4x128xf32>, vector<8x128xf32> -> vector<8x128xf32>
    %56 = arith.addf %50, %55 : vector<8x128xf32>
    %c0_63 = arith.constant 0 : index
    %c1_64 = arith.constant 1 : index
    %c0_65 = arith.constant 0 : index
    %c9_66 = arith.constant 9 : index
    %57 = vector.load %arg2[%c0_63, %c1_64, %c0_65, %c9_66] : memref<1x4x4x138xf32, #tpu.memory_space<vmem>>, vector<1x1x4x128xf32>
    %58 = vector.shape_cast %57 : vector<1x1x4x128xf32> to vector<4x128xf32>
    %c9_67 = arith.constant 9 : index
    %c0_68 = arith.constant 0 : index
    %c0_69 = arith.constant 0 : index
    %59 = vector.load %arg3[%c9_67, %c0_68, %c0_69] : memref<16x8x4xf32, #tpu.memory_space<vmem>>, vector<1x8x4xf32>
    %60 = vector.shape_cast %59 : vector<1x8x4xf32> to vector<8x4xf32>
    %cst_70 = arith.constant dense<0.000000e+00> : vector<8x128xf32>
    %61 = tpu.matmul %60, %58, %cst_70 {dimension_numbers = #tpu.dot_dimension_numbers<[1], [0], [0], [1], [0, 0, 1, 1], [], []>} : vector<8x4xf32>, vector<4x128xf32>, vector<8x128xf32> -> vector<8x128xf32>
    %62 = arith.addf %56, %61 : vector<8x128xf32>
    %c0_71 = arith.constant 0 : index
    %c0_72 = arith.constant 0 : index
    %c0_73 = arith.constant 0 : index
    %c10 = arith.constant 10 : index
    %63 = vector.load %arg2[%c0_71, %c0_72, %c0_73, %c10] : memref<1x4x4x138xf32, #tpu.memory_space<vmem>>, vector<1x1x4x128xf32>
    %64 = vector.shape_cast %63 : vector<1x1x4x128xf32> to vector<4x128xf32>
    %c10_74 = arith.constant 10 : index
    %c0_75 = arith.constant 0 : index
    %c0_76 = arith.constant 0 : index
    %65 = vector.load %arg3[%c10_74, %c0_75, %c0_76] : memref<16x8x4xf32, #tpu.memory_space<vmem>>, vector<1x8x4xf32>
    %66 = vector.shape_cast %65 : vector<1x8x4xf32> to vector<8x4xf32>
    %cst_77 = arith.constant dense<0.000000e+00> : vector<8x128xf32>
    %67 = tpu.matmul %66, %64, %cst_77 {dimension_numbers = #tpu.dot_dimension_numbers<[1], [0], [0], [1], [0, 0, 1, 1], [], []>} : vector<8x4xf32>, vector<4x128xf32>, vector<8x128xf32> -> vector<8x128xf32>
    %68 = arith.addf %62, %67 : vector<8x128xf32>
    %c0_78 = arith.constant 0 : index
    %c1_79 = arith.constant 1 : index
    %c0_80 = arith.constant 0 : index
    %c10_81 = arith.constant 10 : index
    %69 = vector.load %arg2[%c0_78, %c1_79, %c0_80, %c10_81] : memref<1x4x4x138xf32, #tpu.memory_space<vmem>>, vector<1x1x4x128xf32>
    %70 = vector.shape_cast %69 : vector<1x1x4x128xf32> to vector<4x128xf32>
    %c11 = arith.constant 11 : index
    %c0_82 = arith.constant 0 : index
    %c0_83 = arith.constant 0 : index
    %71 = vector.load %arg3[%c11, %c0_82, %c0_83] : memref<16x8x4xf32, #tpu.memory_space<vmem>>, vector<1x8x4xf32>
    %72 = vector.shape_cast %71 : vector<1x8x4xf32> to vector<8x4xf32>
    %cst_84 = arith.constant dense<0.000000e+00> : vector<8x128xf32>
    %73 = tpu.matmul %72, %70, %cst_84 {dimension_numbers = #tpu.dot_dimension_numbers<[1], [0], [0], [1], [0, 0, 1, 1], [], []>} : vector<8x4xf32>, vector<4x128xf32>, vector<8x128xf32> -> vector<8x128xf32>
    %74 = arith.addf %68, %73 : vector<8x128xf32>
    %c0_85 = arith.constant 0 : index
    %c2_86 = arith.constant 2 : index
    %c0_87 = arith.constant 0 : index
    %c9_88 = arith.constant 9 : index
    %75 = vector.load %arg2[%c0_85, %c2_86, %c0_87, %c9_88] : memref<1x4x4x138xf32, #tpu.memory_space<vmem>>, vector<1x1x4x128xf32>
    %76 = vector.shape_cast %75 : vector<1x1x4x128xf32> to vector<4x128xf32>
    %c12 = arith.constant 12 : index
    %c0_89 = arith.constant 0 : index
    %c0_90 = arith.constant 0 : index
    %77 = vector.load %arg3[%c12, %c0_89, %c0_90] : memref<16x8x4xf32, #tpu.memory_space<vmem>>, vector<1x8x4xf32>
    %78 = vector.shape_cast %77 : vector<1x8x4xf32> to vector<8x4xf32>
    %cst_91 = arith.constant dense<0.000000e+00> : vector<8x128xf32>
    %79 = tpu.matmul %78, %76, %cst_91 {dimension_numbers = #tpu.dot_dimension_numbers<[1], [0], [0], [1], [0, 0, 1, 1], [], []>} : vector<8x4xf32>, vector<4x128xf32>, vector<8x128xf32> -> vector<8x128xf32>
    %80 = arith.addf %74, %79 : vector<8x128xf32>
    %c0_92 = arith.constant 0 : index
    %c3_93 = arith.constant 3 : index
    %c0_94 = arith.constant 0 : index
    %c9_95 = arith.constant 9 : index
    %81 = vector.load %arg2[%c0_92, %c3_93, %c0_94, %c9_95] : memref<1x4x4x138xf32, #tpu.memory_space<vmem>>, vector<1x1x4x128xf32>
    %82 = vector.shape_cast %81 : vector<1x1x4x128xf32> to vector<4x128xf32>
    %c13 = arith.constant 13 : index
    %c0_96 = arith.constant 0 : index
    %c0_97 = arith.constant 0 : index
    %83 = vector.load %arg3[%c13, %c0_96, %c0_97] : memref<16x8x4xf32, #tpu.memory_space<vmem>>, vector<1x8x4xf32>
    %84 = vector.shape_cast %83 : vector<1x8x4xf32> to vector<8x4xf32>
    %cst_98 = arith.constant dense<0.000000e+00> : vector<8x128xf32>
    %85 = tpu.matmul %84, %82, %cst_98 {dimension_numbers = #tpu.dot_dimension_numbers<[1], [0], [0], [1], [0, 0, 1, 1], [], []>} : vector<8x4xf32>, vector<4x128xf32>, vector<8x128xf32> -> vector<8x128xf32>
    %86 = arith.addf %80, %85 : vector<8x128xf32>
    %c0_99 = arith.constant 0 : index
    %c2_100 = arith.constant 2 : index
    %c0_101 = arith.constant 0 : index
    %c10_102 = arith.constant 10 : index
    %87 = vector.load %arg2[%c0_99, %c2_100, %c0_101, %c10_102] : memref<1x4x4x138xf32, #tpu.memory_space<vmem>>, vector<1x1x4x128xf32>
    %88 = vector.shape_cast %87 : vector<1x1x4x128xf32> to vector<4x128xf32>
    %c14 = arith.constant 14 : index
    %c0_103 = arith.constant 0 : index
    %c0_104 = arith.constant 0 : index
    %89 = vector.load %arg3[%c14, %c0_103, %c0_104] : memref<16x8x4xf32, #tpu.memory_space<vmem>>, vector<1x8x4xf32>
    %90 = vector.shape_cast %89 : vector<1x8x4xf32> to vector<8x4xf32>
    %cst_105 = arith.constant dense<0.000000e+00> : vector<8x128xf32>
    %91 = tpu.matmul %90, %88, %cst_105 {dimension_numbers = #tpu.dot_dimension_numbers<[1], [0], [0], [1], [0, 0, 1, 1], [], []>} : vector<8x4xf32>, vector<4x128xf32>, vector<8x128xf32> -> vector<8x128xf32>
    %92 = arith.addf %86, %91 : vector<8x128xf32>
    %c0_106 = arith.constant 0 : index
    %c3_107 = arith.constant 3 : index
    %c0_108 = arith.constant 0 : index
    %c10_109 = arith.constant 10 : index
    %93 = vector.load %arg2[%c0_106, %c3_107, %c0_108, %c10_109] : memref<1x4x4x138xf32, #tpu.memory_space<vmem>>, vector<1x1x4x128xf32>
    %94 = vector.shape_cast %93 : vector<1x1x4x128xf32> to vector<4x128xf32>
    %c15 = arith.constant 15 : index
    %c0_110 = arith.constant 0 : index
    %c0_111 = arith.constant 0 : index
    %95 = vector.load %arg3[%c15, %c0_110, %c0_111] : memref<16x8x4xf32, #tpu.memory_space<vmem>>, vector<1x8x4xf32>
    %96 = vector.shape_cast %95 : vector<1x8x4xf32> to vector<8x4xf32>
    %cst_112 = arith.constant dense<0.000000e+00> : vector<8x128xf32>
    %97 = tpu.matmul %96, %94, %cst_112 {dimension_numbers = #tpu.dot_dimension_numbers<[1], [0], [0], [1], [0, 0, 1, 1], [], []>} : vector<8x4xf32>, vector<4x128xf32>, vector<8x128xf32> -> vector<8x128xf32>
    %98 = arith.addf %92, %97 : vector<8x128xf32>
    %c0_113 = arith.constant 0 : index
    %c0_114 = arith.constant 0 : index
    %c0_115 = arith.constant 0 : index
    %99 = vector.load %arg5[%c0_113, %c0_114, %c0_115] : memref<1x8x128xf32, #tpu.memory_space<vmem>>, vector<1x8x128xf32>
    %100 = vector.shape_cast %99 : vector<1x8x128xf32> to vector<8x128xf32>
    %101 = vector.shape_cast %98 : vector<8x128xf32> to vector<1x8x128xf32>
    tpu.vector_store %arg5[%c0_113, %c0_114, %c0_115], %101 {strides = array<i32>} : memref<1x8x128xf32, #tpu.memory_space<vmem>>, vector<1x8x128xf32>,
    return
  }
  func.func @transform_0(%arg0: i32, %arg1: i32) -> (i32, i32, i32, i32) {
    %c0_i32 = arith.constant 0 : i32
    %c0_i32_0 = arith.constant 0 : i32
    %c0_i32_1 = arith.constant 0 : i32
    %c0_i32_2 = arith.constant 0 : i32
    return %arg0, %c0_i32, %c0_i32_0, %c0_i32_1 : i32, i32, i32, i32
  }
  func.func @transform_1(%arg0: i32, %arg1: i32) -> (i32, i32, i32) {
    %c0_i32 = arith.constant 0 : i32
    %c0_i32_0 = arith.constant 0 : i32
    %c0_i32_1 = arith.constant 0 : i32
    return %c0_i32, %arg1, %c0_i32_0 : i32, i32, i32
  }
  func.func @transform_2(%arg0: i32, %arg1: i32) -> (i32, i32) {
    %c0_i32 = arith.constant 0 : i32
    %c0_i32_0 = arith.constant 0 : i32
    return %arg1, %c0_i32 : i32, i32
  }
  func.func @transform_3(%arg0: i32, %arg1: i32) -> (i32, i32, i32) {
    %c0_i32 = arith.constant 0 : i32
    %c0_i32_0 = arith.constant 0 : i32
    return %arg0, %arg1, %c0_i32 : i32, i32, i32
  }
}

</mosaic_0001>

<llo_original>
// kernel: tpu_custom_call.1
$region0: #{tpu_custom_call.1}
  #allocation0 [shape = 'u32[]', space=smem, size = 0x4, offset = 0x4, fixed_abs, tag = 'smem constant byte address 0x4 - core index']
  #allocation1 [shape = 'u32[144,128]{1,0:T(1,128)}', space=vmem, size = 0x12000, scoped, tag = 'internal scratch']
  %s0 = inlined_call_operand.vmem [shape: f32[2,4,4,138], index: 0, kind: input, shape index: {}]
  %s1 = inlined_call_operand.vmem [shape: f32[16,8,4], index: 1, kind: input, shape index: {}]
  %s2 = inlined_call_operand.vmem [shape: f32[8,1], index: 2, kind: input, shape index: {}]
  %s3 = inlined_call_operand.hbm [shape: f32[2,8,128], index: 3, kind: output, shape index: {}]
  %s4 = sld [smem:[#allocation0]]
  $region45: #{tpu_custom_call.1} parent=0
    _
  %s6 = ssub.s32 1, %s4
  %s7 = scalar_select 0, %s6, %s4
  $region1: #{tpu_custom_call.1} parent=0
    #allocation2 [shape = 'u8[8192]{0}', space=vmem, size = 0x2000, scoped, tag = 'output window, operand 0']
    #allocation3 [shape = 's32[2]{0}', space=sflag, size = 0x8, scoped, tag = 'scoped memory for tpu_custom_call.1']
    %8 = vsyncpa [#allocation3], 0
    %s9 = scalar_lea.sflag [#allocation3], 1
    %10 = vsyncpa %s9, 0
    loop: start=0, step=1, limit=4
    $region2: #{tpu_custom_call.1} parent=1 // loop_pre_header
      _
    $region3: #{tpu_custom_call.1} parent=1 // loop_header
      %s12 = sphi 0, %s16
      %p13 = scmp.ge.s32.totalorder %s12, 4
      %s19 = sphi 0, %s31
      %s20 = sphi 0, %s27
      %s21 = sphi 0, %s19
      %s22 = sphi 0, %s20
      %s23 = sphi 0, %s21
      %s24 = sphi 0, %s22
      %s34 = sphi 0, %s36
      %s37 = sphi 0, %s34
      %s38 = sphi 0, %s37
      %s54 = sphi 0, %s38
      %s60 = sphi 0, %s62
      %s63 = sphi 0, %s60
      %s64 = sphi 0, %s63
      %s80 = sphi 0, %s64
      %s86 = sphi 0, %s88
      %s89 = sphi 0, %s86
      %s90 = sphi 0, %s89
      %s106 = sphi 0, %s90
      %s114 = sphi 0, %s116
      %s117 = sphi 0, %s114
      %s118 = sphi 0, %s117
      %s134 = sphi 0, %s118
    $region4: #{tpu_custom_call.1} parent=1 // loop_header_branch
      %15 = sbr.rel (%p13) target = $region8
    $region5: #{tpu_custom_call.1} parent=1 // loop_body
      %s17 = ssub.s32 %s12, 1
      %s18 = ssub.s32 %s12, 2
      %s25 = sadd.s32 1, %s20
      %p26 = scmp.ge.s32.totalorder %s25, 1
      %s27 = scalar_select %p26, 0, %s25
      %s28 = sadd.s32 1, %s19
      %s29 = scalar_select %p26, %s28, %s19
      %p30 = scmp.ge.s32.totalorder %s29, 2
      %s31 = scalar_select %p30, 0, %s29
      %s32 = ssub.s32 %s19, %s31
      %p33 = scmp.eq.s32.totalorder %s32, 0
      %s35 = sadd.s32 %s34, 1
      %s36 = scalar_select %p33, %s34, %s35
      %p39 = pneg %p33
      %p40 = scmp.eq.s32.totalorder %s12, 1
      %p41 = por %p39, %p40
      %p42 = scmp.ne.s32.totalorder %s34, %s37
      %p43 = scmp.eq.s32.totalorder %s12, 0
      %p44 = por %p42, %p43
      %p45 = scmp.ne.s32.totalorder %s34, %s37
      %p46 = scmp.eq.s32.totalorder %s17, 1
      %p47 = por %p45, %p46
      %p48 = scmp.ne.s32.totalorder %s37, %s38
      %p49 = scmp.eq.s32.totalorder %s17, 0
      %p50 = por %p48, %p49
      %p51 = scmp.ne.s32.totalorder %s37, %s38
      %p52 = scmp.eq.s32.totalorder %s18, 1
      %p53 = por %p51, %p52
      %p55 = scmp.ne.s32.totalorder %s38, %s54
      %p56 = scmp.eq.s32.totalorder %s18, 0
      %p57 = por %p55, %p56
      %s58 = ssub.s32 %s20, %s27
      %p59 = scmp.eq.s32.totalorder %s58, 0
      %s61 = sadd.s32 %s60, 1
      %s62 = scalar_select %p59, %s60, %s61
      %p65 = pneg %p59
      %p66 = scmp.eq.s32.totalorder %s12, 1
      %p67 = por %p65, %p66
      %p68 = scmp.ne.s32.totalorder %s60, %s63
      %p69 = scmp.eq.s32.totalorder %s12, 0
      %p70 = por %p68, %p69
      %p71 = scmp.ne.s32.totalorder %s60, %s63
      %p72 = scmp.eq.s32.totalorder %s17, 1
      %p73 = por %p71, %p72
      %p74 = scmp.ne.s32.totalorder %s63, %s64
      %p75 = scmp.eq.s32.totalorder %s17, 0
      %p76 = por %p74, %p75
      %p77 = scmp.ne.s32.totalorder %s63, %s64
      %p78 = scmp.eq.s32.totalorder %s18, 1
      %p79 = por %p77, %p78
      %p81 = scmp.ne.s32.totalorder %s64, %s80
      %p82 = scmp.eq.s32.totalorder %s18, 0
      %p83 = por %p81, %p82
      %s84 = ssub.s32 %s20, %s27
      %p85 = scmp.eq.s32.totalorder %s84, 0
      %s87 = sadd.s32 %s86, 1
      %s88 = scalar_select %p85, %s86, %s87
      %p91 = pneg %p85
      %p92 = scmp.eq.s32.totalorder %s12, 1
      %p93 = por %p91, %p92
      %p94 = scmp.ne.s32.totalorder %s86, %s89
      %p95 = scmp.eq.s32.totalorder %s12, 0
      %p96 = por %p94, %p95
      %p97 = scmp.ne.s32.totalorder %s86, %s89
      %p98 = scmp.eq.s32.totalorder %s17, 1
      %p99 = por %p97, %p98
      %p100 = scmp.ne.s32.totalorder %s89, %s90
      %p101 = scmp.eq.s32.totalorder %s17, 0
      %p102 = por %p100, %p101
      %p103 = scmp.ne.s32.totalorder %s89, %s90
      %p104 = scmp.eq.s32.totalorder %s18, 1
      %p105 = por %p103, %p104
      %p107 = scmp.ne.s32.totalorder %s90, %s106
      %p108 = scmp.eq.s32.totalorder %s18, 0
      %p109 = por %p107, %p108
      %s110 = ssub.s32 %s19, %s31
      %s111 = ssub.s32 %s20, %s27
      %s112 = sor.u32 %s110, %s111
      %p113 = scmp.eq.s32.totalorder %s112, 0
      %s115 = sadd.s32 %s114, 1
      %s116 = scalar_select %p113, %s114, %s115
      %p119 = pneg %p113
      %p120 = scmp.eq.s32.totalorder %s12, 1
      %p121 = por %p119, %p120
      %p122 = scmp.ne.s32.totalorder %s114, %s117
      %p123 = scmp.eq.s32.totalorder %s12, 0
      %p124 = por %p122, %p123
      %p125 = scmp.ne.s32.totalorder %s114, %s117
      %p126 = scmp.eq.s32.totalorder %s17, 1
      %p127 = por %p125, %p126
      %p128 = scmp.ne.s32.totalorder %s117, %s118
      %p129 = scmp.eq.s32.totalorder %s17, 0
      %p130 = por %p128, %p129
      %p131 = scmp.ne.s32.totalorder %s117, %s118
      %p132 = scmp.eq.s32.totalorder %s18, 1
      %p133 = por %p131, %p132
      %p135 = scmp.ne.s32.totalorder %s118, %s134
      %p136 = scmp.eq.s32.totalorder %s18, 0
      %p137 = por %p135, %p136
      %p138 = scmp.le.s32.totalorder 1, %s12
      %p139 = scmp.lt.s32.totalorder %s12, 3
      %p140 = pnand %p138, %p139
      %p141 = pneg %p140
      // Predicated region
      $region9: #{tpu_custom_call.1} parent=5 // pred_check
        _
      $region10: #{tpu_custom_call.1} parent=5 // pred_check_branch
        %143 = sbr.rel (%p140) target = $region12
      $region11: #{tpu_custom_call.1} parent=5 // pred_region
        %s144 = ssub.s32 %s12, 1
        // Predicated region
        $region13: #{tpu_custom_call.1} parent=11 // pred_check
          %p145 = pneg %p76
        $region14: #{tpu_custom_call.1} parent=11 // pred_check_branch
          %147 = sbr.rel (%p145) target = $region16
        $region15: #{tpu_custom_call.1} parent=11 // pred_region
          %p148 = scmp.lt.s32.totalorder %s22, 0
          %s149 = scalar_select %p148, %s22, 0
          %s150 = smul.addr %s149, 8
          %s151 = scalar_lea.vmem %s1, %s150
        $region16: #{tpu_custom_call.1} parent=11 // pred_fallthru
          _
        // Predicated region
        $region17: #{tpu_custom_call.1} parent=11 // pred_check
          %p152 = pneg %p102
        $region18: #{tpu_custom_call.1} parent=11 // pred_check_branch
          %154 = sbr.rel (%p152) target = $region20
        $region19: #{tpu_custom_call.1} parent=11 // pred_region
          %p155 = scmp.lt.s32.totalorder %s22, 0
          %s156 = scalar_select %p155, %s22, 0
          %s157 = smul.addr %s156, 8
          %s158 = scalar_lea.vmem %s2, %s157
        $region20: #{tpu_custom_call.1} parent=11 // pred_fallthru
          _
      $region12: #{tpu_custom_call.1} parent=5 // pred_fallthru
        _
      %p159 = scmp.lt.s32.totalorder %s12, 2
      // Predicated region
      $region21: #{tpu_custom_call.1} parent=5 // pred_check
        %p160 = pneg %p159
      $region22: #{tpu_custom_call.1} parent=5 // pred_check_branch
        %162 = sbr.rel (%p160) target = $region24
      $region23: #{tpu_custom_call.1} parent=5 // pred_region
        // Predicated region
        $region25: #{tpu_custom_call.1} parent=23 // pred_check
          %p163 = pneg %p44
        $region26: #{tpu_custom_call.1} parent=23 // pred_check_branch
          %165 = sbr.rel (%p163) target = $region28
        $region27: #{tpu_custom_call.1} parent=23 // pred_region
          %p166 = scmp.lt.s32.totalorder %s19, 1
          %s167 = scalar_select %p166, %s19, 1
          %s168 = smul.addr %s167, 8
          %s169 = smul.addr %s168, 4
          %s170 = scalar_lea.vmem %s0, %s169
        $region28: #{tpu_custom_call.1} parent=23 // pred_fallthru
          _
      $region24: #{tpu_custom_call.1} parent=5 // pred_fallthru
        _
      %p171 = scmp.le.s32.totalorder 1, %s12
      %p172 = scmp.lt.s32.totalorder %s12, 3
      %p173 = pnand %p171, %p172
      %p174 = pneg %p173
      // Predicated region
      $region29: #{tpu_custom_call.1} parent=5 // pred_check
        _
      $region30: #{tpu_custom_call.1} parent=5 // pred_check_branch
        %176 = sbr.rel (%p173) target = $region32
      $region31: #{tpu_custom_call.1} parent=5 // pred_region
        %s177 = ssub.s32 %s12, 1
        %p178 = scmp.lt.s32.totalorder %s21, 1
        %s179 = scalar_select %p178, %s21, 1
        %s180 = smul.addr %s179, 8
        %s181 = smul.addr %s180, 4
        %s182 = scalar_lea.vmem %s0, %s181
        %p183 = pneg %p50
        %p184 = pneg %p47
        %p185 = scmp.lt.s32.totalorder %s22, 0
        %s186 = scalar_select %p185, %s22, 0
        %s187 = smul.addr %s186, 8
        %s188 = scalar_lea.vmem %s1, %s187
        %p189 = pneg %p76
        %p190 = pneg %p73
        %p191 = scmp.lt.s32.totalorder %s22, 0
        %s192 = scalar_select %p191, %s22, 0
        %s193 = smul.addr %s192, 8
        %s194 = scalar_lea.vmem %s2, %s193
        %p195 = pneg %p102
        %p196 = pneg %p99
        %p197 = pneg %p130
        %p198 = pneg %p127
        %s199 = sand.u32 %s117, 1
        %s200 = scalar_lea.sflag [#allocation3], %s199
        %s201 = sand.u32 %s117, 1
        %s202 = smul.addr %s201, 8
        %s203 = scalar_lea.vmem [#allocation2], %s202
        %p204 = scmp.lt.s32.totalorder %s21, 1
        %s205 = scalar_select %p204, %s21, 1
        %s206 = smul.addr %s205, 8
        %s207 = smul.addr %s206, 4
        %s208 = scalar_lea.vmem %s0, %s207
        %p209 = scmp.lt.s32.totalorder %s22, 0
        %s210 = scalar_select %p209, %s22, 0
        %s211 = smul.addr %s210, 8
        %s212 = scalar_lea.vmem %s1, %s211
        %p213 = scmp.lt.s32.totalorder %s22, 0
        %s214 = scalar_select %p213, %s22, 0
        %s215 = smul.addr %s214, 8
        %s216 = scalar_lea.vmem %s2, %s215
        %v217 = vld [vmem:[%s216] sm:$0xff]
        %219 = vset.pattern.permute.xlu0 0
        %220 = vperm.xlu0 %219, %v217
        %v221 = vpop.permute.xlu0 %220
        %v223 = vld [vmem:[%s208] sm:$0xf]
        %v224 = vld [vmem:[%s212] sm:$0xff]
        %vm225 = vcmask 31744
        %v227 = vsel %vm225, %v224, 0
        %vm229 = vcmask 1043456
        %v231 = vsel %vm229, %v223, 0
        %233 = vmatprep.subr.mxu0 0.0
        %234 = vmatpush1.msra.mxu0 0.0
        %235 = vmatprep.subr.mxu0 0.0
        %236 = vmatpush1.msra.mxu0 0.0
        %237 = vmatprep.subr.mxu0 0.0
        %238 = vmatpush1.msra.mxu0 0.0
        %239 = vmatprep.subr.mxu0 0.0
        %240 = vmatpush1.msra.mxu0 0.0
        %241 = vmatprep.subr.mxu0 0.0
        %242 = vmatpush1.msra.mxu0 0.0
        %243 = vmatprep.subr.mxu0 0.0
        %244 = vmatpush1.msra.mxu0 0.0
        %245 = vmatprep.subr.mxu0 0.0
        %246 = vmatpush1.msra.mxu0 0.0
        %247 = vmatprep.subr.mxu0 0.0
        %248 = vmatpush1.msra.mxu0 0.0
        %249 = vmatprep.subr.mxu0 0.0
        %250 = vmatpush1.msra.mxu0 0.0
        %251 = vmatprep.subr.mxu0 0.0
        %252 = vmatpush1.msra.mxu0 0.0
        %253 = vmatprep.subr.mxu0 0.0
        %254 = vmatpush1.msra.mxu0 0.0
        %255 = vmatprep.subr.mxu0 0.0
        %256 = vmatpush1.msra.mxu0 0.0
        %257 = vmatprep.subr.mxu0 0.0
        %258 = vmatpush1.msra.mxu0 0.0
        %259 = vmatprep.subr.mxu0 0.0
        %260 = vmatpush1.msra.mxu0 0.0
        %261 = vmatprep.subr.mxu0 0.0
        %262 = vmatpush1.msra.mxu0 0.0
        %263 = vmatprep.subr.mxu0 0.0
        %264 = vmatpush1.msra.mxu0 %v231
        %265 = vmatprep.subr.mxu0 0.0
        %266 = vmatpush2.msra.mxu0 0.0
        %267 = vmatprep.subr.mxu0 0.0
        %268 = vmatpush2.msra.mxu0 0.0
        %269 = vmatprep.subr.mxu0 0.0
        %270 = vmatpush2.msra.mxu0 0.0
        %271 = vmatprep.subr.mxu0 0.0
        %272 = vmatpush2.msra.mxu0 0.0
        %273 = vmatprep.subr.mxu0 0.0
        %274 = vmatpush2.msra.mxu0 0.0
        %275 = vmatprep.subr.mxu0 0.0
        %276 = vmatpush2.msra.mxu0 0.0
        %277 = vmatprep.subr.mxu0 0.0
        %278 = vmatpush2.msra.mxu0 0.0
        %279 = vmatprep.subr.mxu0 0.0
        %280 = vmatpush2.msra.mxu0 0.0
        %281 = vmatprep.subr.mxu0 0.0
        %282 = vmatpush2.msra.mxu0 0.0
        %283 = vmatprep.subr.mxu0 0.0
        %284 = vmatpush2.msra.mxu0 0.0
        %285 = vmatprep.subr.mxu0 0.0
        %286 = vmatpush2.msra.mxu0 0.0
        %287 = vmatprep.subr.mxu0 0.0
        %288 = vmatpush2.msra.mxu0 0.0
        %289 = vmatprep.subr.mxu0 0.0
        %290 = vmatpush2.msra.mxu0 0.0
        %291 = vmatprep.subr.mxu0 0.0
        %292 = vmatpush2.msra.mxu0 0.0
        %293 = vmatprep.subr.mxu0 0.0
        %294 = vmatpush2.msra.mxu0 0.0
        %295 = vmatprep.subr.mxu0 0.0
        %296 = vmatpush2.msra.mxu0 0.0
        %297 = vmatprep.mubr.f32.mxu0 0.0
        %298 = vmatmul.mubr.f32.gmra.mxu0 %v227
        %v299 = vpop.f32.mrf.mxu0
        %v300 = vadd.f32 0.0, %v299
        %v301 = vpop.f32.mrf.mxu0
        %302 = vdwg.mxu0
        %v303 = vadd.f32 %v221, %v300
        %s304 = scalar_lea.vmem %s208, 8
        %v305 = vld [vmem:[%s304] sm:$0xf]
        %s306 = scalar_lea.vmem %s212, 8
        %v307 = vld [vmem:[%s306] sm:$0xff]
        %v309 = vsel %vm225, %v307, 0
        %v312 = vsel %vm229, %v305, 0
        %314 = vmatprep.subr.mxu0 0.0
        %315 = vmatpush1.msra.mxu0 0.0
        %316 = vmatprep.subr.mxu0 0.0
        %317 = vmatpush1.msra.mxu0 0.0
        %318 = vmatprep.subr.mxu0 0.0
        %319 = vmatpush1.msra.mxu0 0.0
        %320 = vmatprep.subr.mxu0 0.0
        %321 = vmatpush1.msra.mxu0 0.0
        %322 = vmatprep.subr.mxu0 0.0
        %323 = vmatpush1.msra.mxu0 0.0
        %324 = vmatprep.subr.mxu0 0.0
        %325 = vmatpush1.msra.mxu0 0.0
        %326 = vmatprep.subr.mxu0 0.0
        %327 = vmatpush1.msra.mxu0 0.0
        %328 = vmatprep.subr.mxu0 0.0
        %329 = vmatpush1.msra.mxu0 0.0
        %330 = vmatprep.subr.mxu0 0.0
        %331 = vmatpush1.msra.mxu0 0.0
        %332 = vmatprep.subr.mxu0 0.0
        %333 = vmatpush1.msra.mxu0 0.0
        %334 = vmatprep.subr.mxu0 0.0
        %335 = vmatpush1.msra.mxu0 0.0
        %336 = vmatprep.subr.mxu0 0.0
        %337 = vmatpush1.msra.mxu0 0.0
        %338 = vmatprep.subr.mxu0 0.0
        %339 = vmatpush1.msra.mxu0 0.0
        %340 = vmatprep.subr.mxu0 0.0
        %341 = vmatpush1.msra.mxu0 0.0
        %342 = vmatprep.subr.mxu0 0.0
        %343 = vmatpush1.msra.mxu0 0.0
        %344 = vmatprep.subr.mxu0 0.0
        %345 = vmatpush1.msra.mxu0 %v312
        %346 = vmatprep.subr.mxu0 0.0
        %347 = vmatpush2.msra.mxu0 0.0
        %348 = vmatprep.subr.mxu0 0.0
        %349 = vmatpush2.msra.mxu0 0.0
        %350 = vmatprep.subr.mxu0 0.0
        %351 = vmatpush2.msra.mxu0 0.0
        %352 = vmatprep.subr.mxu0 0.0
        %353 = vmatpush2.msra.mxu0 0.0
        %354 = vmatprep.subr.mxu0 0.0
        %355 = vmatpush2.msra.mxu0 0.0
        %356 = vmatprep.subr.mxu0 0.0
        %357 = vmatpush2.msra.mxu0 0.0
        %358 = vmatprep.subr.mxu0 0.0
        %359 = vmatpush2.msra.mxu0 0.0
        %360 = vmatprep.subr.mxu0 0.0
        %361 = vmatpush2.msra.mxu0 0.0
        %362 = vmatprep.subr.mxu0 0.0
        %363 = vmatpush2.msra.mxu0 0.0
        %364 = vmatprep.subr.mxu0 0.0
        %365 = vmatpush2.msra.mxu0 0.0
        %366 = vmatprep.subr.mxu0 0.0
        %367 = vmatpush2.msra.mxu0 0.0
        %368 = vmatprep.subr.mxu0 0.0
        %369 = vmatpush2.msra.mxu0 0.0
        %370 = vmatprep.subr.mxu0 0.0
        %371 = vmatpush2.msra.mxu0 0.0
        %372 = vmatprep.subr.mxu0 0.0
        %373 = vmatpush2.msra.mxu0 0.0
        %374 = vmatprep.subr.mxu0 0.0
        %375 = vmatpush2.msra.mxu0 0.0
        %376 = vmatprep.subr.mxu0 0.0
        %377 = vmatpush2.msra.mxu0 0.0
        %378 = vmatprep.mubr.f32.mxu0 0.0
        %379 = vmatmul.mubr.f32.gmra.mxu0 %v309
        %v380 = vpop.f32.mrf.mxu0
        %v381 = vadd.f32 0.0, %v380
        %v382 = vpop.f32.mrf.mxu0
        %383 = vdwg.mxu0
        %v384 = vadd.f32 %v303, %v381
        %v385 = vld [vmem:[%s208] sm:$0xff]
        %s386 = scalar_lea.vmem %s212, 16
        %v387 = vld [vmem:[%s386] sm:$0xff]
        %v389 = vcombine.high %v385, %v385
        %390 = vrot.lane.b32.xlu0 %v385, 127
        %v391 = vpop.permute.xlu0 %390
        %392 = vrot.lane.b32.xlu0 %v389, 127
        %v393 = vpop.permute.xlu0 %392
        %vm394 = vcmask 1039360
        %v395 = vsel %vm394, %v391, %v393
        %v397 = vsel %vm225, %v387, 0
        %v399 = vsel %vm229, %v395, 0
        %401 = vmatprep.subr.mxu0 0.0
        %402 = vmatpush1.msra.mxu0 0.0
        %403 = vmatprep.subr.mxu0 0.0
        %404 = vmatpush1.msra.mxu0 0.0
        %405 = vmatprep.subr.mxu0 0.0
        %406 = vmatpush1.msra.mxu0 0.0
        %407 = vmatprep.subr.mxu0 0.0
        %408 = vmatpush1.msra.mxu0 0.0
        %409 = vmatprep.subr.mxu0 0.0
        %410 = vmatpush1.msra.mxu0 0.0
        %411 = vmatprep.subr.mxu0 0.0
        %412 = vmatpush1.msra.mxu0 0.0
        %413 = vmatprep.subr.mxu0 0.0
        %414 = vmatpush1.msra.mxu0 0.0
        %415 = vmatprep.subr.mxu0 0.0
        %416 = vmatpush1.msra.mxu0 0.0
        %417 = vmatprep.subr.mxu0 0.0
        %418 = vmatpush1.msra.mxu0 0.0
        %419 = vmatprep.subr.mxu0 0.0
        %420 = vmatpush1.msra.mxu0 0.0
        %421 = vmatprep.subr.mxu0 0.0
        %422 = vmatpush1.msra.mxu0 0.0
        %423 = vmatprep.subr.mxu0 0.0
        %424 = vmatpush1.msra.mxu0 0.0
        %425 = vmatprep.subr.mxu0 0.0
        %426 = vmatpush1.msra.mxu0 0.0
        %427 = vmatprep.subr.mxu0 0.0
        %428 = vmatpush1.msra.mxu0 0.0
        %429 = vmatprep.subr.mxu0 0.0
        %430 = vmatpush1.msra.mxu0 0.0
        %431 = vmatprep.subr.mxu0 0.0
        %432 = vmatpush1.msra.mxu0 %v399
        %433 = vmatprep.subr.mxu0 0.0
        %434 = vmatpush2.msra.mxu0 0.0
        %435 = vmatprep.subr.mxu0 0.0
        %436 = vmatpush2.msra.mxu0 0.0
        %437 = vmatprep.subr.mxu0 0.0
        %438 = vmatpush2.msra.mxu0 0.0
        %439 = vmatprep.subr.mxu0 0.0
        %440 = vmatpush2.msra.mxu0 0.0
        %441 = vmatprep.subr.mxu0 0.0
        %442 = vmatpush2.msra.mxu0 0.0
        %443 = vmatprep.subr.mxu0 0.0
        %444 = vmatpush2.msra.mxu0 0.0
        %445 = vmatprep.subr.mxu0 0.0
        %446 = vmatpush2.msra.mxu0 0.0
        %447 = vmatprep.subr.mxu0 0.0
        %448 = vmatpush2.msra.mxu0 0.0
        %449 = vmatprep.subr.mxu0 0.0
        %450 = vmatpush2.msra.mxu0 0.0
        %451 = vmatprep.subr.mxu0 0.0
        %452 = vmatpush2.msra.mxu0 0.0
        %453 = vmatprep.subr.mxu0 0.0
        %454 = vmatpush2.msra.mxu0 0.0
        %455 = vmatprep.subr.mxu0 0.0
        %456 = vmatpush2.msra.mxu0 0.0
        %457 = vmatprep.subr.mxu0 0.0
        %458 = vmatpush2.msra.mxu0 0.0
        %459 = vmatprep.subr.mxu0 0.0
        %460 = vmatpush2.msra.mxu0 0.0
        %461 = vmatprep.subr.mxu0 0.0
        %462 = vmatpush2.msra.mxu0 0.0
        %463 = vmatprep.subr.mxu0 0.0
        %464 = vmatpush2.msra.mxu0 0.0
        %465 = vmatprep.mubr.f32.mxu0 0.0
        %466 = vmatmul.mubr.f32.gmra.mxu0 %v397
        %v467 = vpop.f32.mrf.mxu0
        %v468 = vadd.f32 0.0, %v467
        %v469 = vpop.f32.mrf.mxu0
        %470 = vdwg.mxu0
        %v471 = vadd.f32 %v384, %v468
        %v472 = vld [vmem:[%s304] sm:$0xff]
        %s473 = scalar_lea.vmem %s212, 24
        %v474 = vld [vmem:[%s473] sm:$0xff]
        %v476 = vcombine.high %v472, %v472
        %477 = vrot.lane.b32.xlu0 %v472, 127
        %v478 = vpop.permute.xlu0 %477
        %479 = vrot.lane.b32.xlu0 %v476, 127
        %v480 = vpop.permute.xlu0 %479
        %v481 = vsel %vm394, %v478, %v480
        %v483 = vsel %vm225, %v474, 0
        %v485 = vsel %vm229, %v481, 0
        %487 = vmatprep.subr.mxu0 0.0
        %488 = vmatpush1.msra.mxu0 0.0
        %489 = vmatprep.subr.mxu0 0.0
        %490 = vmatpush1.msra.mxu0 0.0
        %491 = vmatprep.subr.mxu0 0.0
        %492 = vmatpush1.msra.mxu0 0.0
        %493 = vmatprep.subr.mxu0 0.0
        %494 = vmatpush1.msra.mxu0 0.0
        %495 = vmatprep.subr.mxu0 0.0
        %496 = vmatpush1.msra.mxu0 0.0
        %497 = vmatprep.subr.mxu0 0.0
        %498 = vmatpush1.msra.mxu0 0.0
        %499 = vmatprep.subr.mxu0 0.0
        %500 = vmatpush1.msra.mxu0 0.0
        %501 = vmatprep.subr.mxu0 0.0
        %502 = vmatpush1.msra.mxu0 0.0
        %503 = vmatprep.subr.mxu0 0.0
        %504 = vmatpush1.msra.mxu0 0.0
        %505 = vmatprep.subr.mxu0 0.0
        %506 = vmatpush1.msra.mxu0 0.0
        %507 = vmatprep.subr.mxu0 0.0
        %508 = vmatpush1.msra.mxu0 0.0
        %509 = vmatprep.subr.mxu0 0.0
        %510 = vmatpush1.msra.mxu0 0.0
        %511 = vmatprep.subr.mxu0 0.0
        %512 = vmatpush1.msra.mxu0 0.0
        %513 = vmatprep.subr.mxu0 0.0
        %514 = vmatpush1.msra.mxu0 0.0
        %515 = vmatprep.subr.mxu0 0.0
        %516 = vmatpush1.msra.mxu0 0.0
        %517 = vmatprep.subr.mxu0 0.0
        %518 = vmatpush1.msra.mxu0 %v485
        %519 = vmatprep.subr.mxu0 0.0
        %520 = vmatpush2.msra.mxu0 0.0
        %521 = vmatprep.subr.mxu0 0.0
        %522 = vmatpush2.msra.mxu0 0.0
        %523 = vmatprep.subr.mxu0 0.0
        %524 = vmatpush2.msra.mxu0 0.0
        %525 = vmatprep.subr.mxu0 0.0
        %526 = vmatpush2.msra.mxu0 0.0
        %527 = vmatprep.subr.mxu0 0.0
        %528 = vmatpush2.msra.mxu0 0.0
        %529 = vmatprep.subr.mxu0 0.0
        %530 = vmatpush2.msra.mxu0 0.0
        %531 = vmatprep.subr.mxu0 0.0
        %532 = vmatpush2.msra.mxu0 0.0
        %533 = vmatprep.subr.mxu0 0.0
        %534 = vmatpush2.msra.mxu0 0.0
        %535 = vmatprep.subr.mxu0 0.0
        %536 = vmatpush2.msra.mxu0 0.0
        %537 = vmatprep.subr.mxu0 0.0
        %538 = vmatpush2.msra.mxu0 0.0
        %539 = vmatprep.subr.mxu0 0.0
        %540 = vmatpush2.msra.mxu0 0.0
        %541 = vmatprep.subr.mxu0 0.0
        %542 = vmatpush2.msra.mxu0 0.0
        %543 = vmatprep.subr.mxu0 0.0
        %544 = vmatpush2.msra.mxu0 0.0
        %545 = vmatprep.subr.mxu0 0.0
        %546 = vmatpush2.msra.mxu0 0.0
        %547 = vmatprep.subr.mxu0 0.0
        %548 = vmatpush2.msra.mxu0 0.0
        %549 = vmatprep.subr.mxu0 0.0
        %550 = vmatpush2.msra.mxu0 0.0
        %551 = vmatprep.mubr.f32.mxu0 0.0
        %552 = vmatmul.mubr.f32.gmra.mxu0 %v483
        %v553 = vpop.f32.mrf.mxu0
        %v554 = vadd.f32 0.0, %v553
        %v555 = vpop.f32.mrf.mxu0
        %556 = vdwg.mxu0
        %v557 = vadd.f32 %v471, %v554
        %s558 = scalar_lea.vmem %s208, 16
        %v559 = vld [vmem:[%s558] sm:$0xf]
        %s560 = scalar_lea.vmem %s212, 32
        %v561 = vld [vmem:[%s560] sm:$0xff]
        %v563 = vsel %vm225, %v561, 0
        %v566 = vsel %vm229, %v559, 0
        %568 = vmatprep.subr.mxu0 0.0
        %569 = vmatpush1.msra.mxu0 0.0
        %570 = vmatprep.subr.mxu0 0.0
        %571 = vmatpush1.msra.mxu0 0.0
        %572 = vmatprep.subr.mxu0 0.0
        %573 = vmatpush1.msra.mxu0 0.0
        %574 = vmatprep.subr.mxu0 0.0
        %575 = vmatpush1.msra.mxu0 0.0
        %576 = vmatprep.subr.mxu0 0.0
        %577 = vmatpush1.msra.mxu0 0.0
        %578 = vmatprep.subr.mxu0 0.0
        %579 = vmatpush1.msra.mxu0 0.0
        %580 = vmatprep.subr.mxu0 0.0
        %581 = vmatpush1.msra.mxu0 0.0
        %582 = vmatprep.subr.mxu0 0.0
        %583 = vmatpush1.msra.mxu0 0.0
        %584 = vmatprep.subr.mxu0 0.0
        %585 = vmatpush1.msra.mxu0 0.0
        %586 = vmatprep.subr.mxu0 0.0
        %587 = vmatpush1.msra.mxu0 0.0
        %588 = vmatprep.subr.mxu0 0.0
        %589 = vmatpush1.msra.mxu0 0.0
        %590 = vmatprep.subr.mxu0 0.0
        %591 = vmatpush1.msra.mxu0 0.0
        %592 = vmatprep.subr.mxu0 0.0
        %593 = vmatpush1.msra.mxu0 0.0
        %594 = vmatprep.subr.mxu0 0.0
        %595 = vmatpush1.msra.mxu0 0.0
        %596 = vmatprep.subr.mxu0 0.0
        %597 = vmatpush1.msra.mxu0 0.0
        %598 = vmatprep.subr.mxu0 0.0
        %599 = vmatpush1.msra.mxu0 %v566
        %600 = vmatprep.subr.mxu0 0.0
        %601 = vmatpush2.msra.mxu0 0.0
        %602 = vmatprep.subr.mxu0 0.0
        %603 = vmatpush2.msra.mxu0 0.0
        %604 = vmatprep.subr.mxu0 0.0
        %605 = vmatpush2.msra.mxu0 0.0
        %606 = vmatprep.subr.mxu0 0.0
        %607 = vmatpush2.msra.mxu0 0.0
        %608 = vmatprep.subr.mxu0 0.0
        %609 = vmatpush2.msra.mxu0 0.0
        %610 = vmatprep.subr.mxu0 0.0
        %611 = vmatpush2.msra.mxu0 0.0
        %612 = vmatprep.subr.mxu0 0.0
        %613 = vmatpush2.msra.mxu0 0.0
        %614 = vmatprep.subr.mxu0 0.0
        %615 = vmatpush2.msra.mxu0 0.0
        %616 = vmatprep.subr.mxu0 0.0
        %617 = vmatpush2.msra.mxu0 0.0
        %618 = vmatprep.subr.mxu0 0.0
        %619 = vmatpush2.msra.mxu0 0.0
        %620 = vmatprep.subr.mxu0 0.0
        %621 = vmatpush2.msra.mxu0 0.0
        %622 = vmatprep.subr.mxu0 0.0
        %623 = vmatpush2.msra.mxu0 0.0
        %624 = vmatprep.subr.mxu0 0.0
        %625 = vmatpush2.msra.mxu0 0.0
        %626 = vmatprep.subr.mxu0 0.0
        %627 = vmatpush2.msra.mxu0 0.0
        %628 = vmatprep.subr.mxu0 0.0
        %629 = vmatpush2.msra.mxu0 0.0
        %630 = vmatprep.subr.mxu0 0.0
        %631 = vmatpush2.msra.mxu0 0.0
        %632 = vmatprep.mubr.f32.mxu0 0.0
        %633 = vmatmul.mubr.f32.gmra.mxu0 %v563
        %v634 = vpop.f32.mrf.mxu0
        %v635 = vadd.f32 0.0, %v634
        %v636 = vpop.f32.mrf.mxu0
        %637 = vdwg.mxu0
        %v638 = vadd.f32 %v557, %v635
        %s639 = scalar_lea.vmem %s208, 24
        %v640 = vld [vmem:[%s639] sm:$0xf]
        %s641 = scalar_lea.vmem %s212, 40
        %v642 = vld [vmem:[%s641] sm:$0xff]
        %v644 = vsel %vm225, %v642, 0
        %v647 = vsel %vm229, %v640, 0
        %649 = vmatprep.subr.mxu0 0.0
        %650 = vmatpush1.msra.mxu0 0.0
        %651 = vmatprep.subr.mxu0 0.0
        %652 = vmatpush1.msra.mxu0 0.0
        %653 = vmatprep.subr.mxu0 0.0
        %654 = vmatpush1.msra.mxu0 0.0
        %655 = vmatprep.subr.mxu0 0.0
        %656 = vmatpush1.msra.mxu0 0.0
        %657 = vmatprep.subr.mxu0 0.0
        %658 = vmatpush1.msra.mxu0 0.0
        %659 = vmatprep.subr.mxu0 0.0
        %660 = vmatpush1.msra.mxu0 0.0
        %661 = vmatprep.subr.mxu0 0.0
        %662 = vmatpush1.msra.mxu0 0.0
        %663 = vmatprep.subr.mxu0 0.0
        %664 = vmatpush1.msra.mxu0 0.0
        %665 = vmatprep.subr.mxu0 0.0
        %666 = vmatpush1.msra.mxu0 0.0
        %667 = vmatprep.subr.mxu0 0.0
        %668 = vmatpush1.msra.mxu0 0.0
        %669 = vmatprep.subr.mxu0 0.0
        %670 = vmatpush1.msra.mxu0 0.0
        %671 = vmatprep.subr.mxu0 0.0
        %672 = vmatpush1.msra.mxu0 0.0
        %673 = vmatprep.subr.mxu0 0.0
        %674 = vmatpush1.msra.mxu0 0.0
        %675 = vmatprep.subr.mxu0 0.0
        %676 = vmatpush1.msra.mxu0 0.0
        %677 = vmatprep.subr.mxu0 0.0
        %678 = vmatpush1.msra.mxu0 0.0
        %679 = vmatprep.subr.mxu0 0.0
        %680 = vmatpush1.msra.mxu0 %v647
        %681 = vmatprep.subr.mxu0 0.0
        %682 = vmatpush2.msra.mxu0 0.0
        %683 = vmatprep.subr.mxu0 0.0
        %684 = vmatpush2.msra.mxu0 0.0
        %685 = vmatprep.subr.mxu0 0.0
        %686 = vmatpush2.msra.mxu0 0.0
        %687 = vmatprep.subr.mxu0 0.0
        %688 = vmatpush2.msra.mxu0 0.0
        %689 = vmatprep.subr.mxu0 0.0
        %690 = vmatpush2.msra.mxu0 0.0
        %691 = vmatprep.subr.mxu0 0.0
        %692 = vmatpush2.msra.mxu0 0.0
        %693 = vmatprep.subr.mxu0 0.0
        %694 = vmatpush2.msra.mxu0 0.0
        %695 = vmatprep.subr.mxu0 0.0
        %696 = vmatpush2.msra.mxu0 0.0
        %697 = vmatprep.subr.mxu0 0.0
        %698 = vmatpush2.msra.mxu0 0.0
        %699 = vmatprep.subr.mxu0 0.0
        %700 = vmatpush2.msra.mxu0 0.0
        %701 = vmatprep.subr.mxu0 0.0
        %702 = vmatpush2.msra.mxu0 0.0
        %703 = vmatprep.subr.mxu0 0.0
        %704 = vmatpush2.msra.mxu0 0.0
        %705 = vmatprep.subr.mxu0 0.0
        %706 = vmatpush2.msra.mxu0 0.0
        %707 = vmatprep.subr.mxu0 0.0
        %708 = vmatpush2.msra.mxu0 0.0
        %709 = vmatprep.subr.mxu0 0.0
        %710 = vmatpush2.msra.mxu0 0.0
        %711 = vmatprep.subr.mxu0 0.0
        %712 = vmatpush2.msra.mxu0 0.0
        %713 = vmatprep.mubr.f32.mxu0 0.0
        %714 = vmatmul.mubr.f32.gmra.mxu0 %v644
        %v715 = vpop.f32.mrf.mxu0
        %v716 = vadd.f32 0.0, %v715
        %v717 = vpop.f32.mrf.mxu0
        %718 = vdwg.mxu0
        %v719 = vadd.f32 %v638, %v716
        %v720 = vld [vmem:[%s558] sm:$0xff]
        %s721 = scalar_lea.vmem %s212, 48
        %v722 = vld [vmem:[%s721] sm:$0xff]
        %v724 = vcombine.high %v720, %v720
        %725 = vrot.lane.b32.xlu0 %v720, 127
        %v726 = vpop.permute.xlu0 %725
        %727 = vrot.lane.b32.xlu0 %v724, 127
        %v728 = vpop.permute.xlu0 %727
        %v729 = vsel %vm394, %v726, %v728
        %v731 = vsel %vm225, %v722, 0
        %v733 = vsel %vm229, %v729, 0
        %735 = vmatprep.subr.mxu0 0.0
        %736 = vmatpush1.msra.mxu0 0.0
        %737 = vmatprep.subr.mxu0 0.0
        %738 = vmatpush1.msra.mxu0 0.0
        %739 = vmatprep.subr.mxu0 0.0
        %740 = vmatpush1.msra.mxu0 0.0
        %741 = vmatprep.subr.mxu0 0.0
        %742 = vmatpush1.msra.mxu0 0.0
        %743 = vmatprep.subr.mxu0 0.0
        %744 = vmatpush1.msra.mxu0 0.0
        %745 = vmatprep.subr.mxu0 0.0
        %746 = vmatpush1.msra.mxu0 0.0
        %747 = vmatprep.subr.mxu0 0.0
        %748 = vmatpush1.msra.mxu0 0.0
        %749 = vmatprep.subr.mxu0 0.0
        %750 = vmatpush1.msra.mxu0 0.0
        %751 = vmatprep.subr.mxu0 0.0
        %752 = vmatpush1.msra.mxu0 0.0
        %753 = vmatprep.subr.mxu0 0.0
        %754 = vmatpush1.msra.mxu0 0.0
        %755 = vmatprep.subr.mxu0 0.0
        %756 = vmatpush1.msra.mxu0 0.0
        %757 = vmatprep.subr.mxu0 0.0
        %758 = vmatpush1.msra.mxu0 0.0
        %759 = vmatprep.subr.mxu0 0.0
        %760 = vmatpush1.msra.mxu0 0.0
        %761 = vmatprep.subr.mxu0 0.0
        %762 = vmatpush1.msra.mxu0 0.0
        %763 = vmatprep.subr.mxu0 0.0
        %764 = vmatpush1.msra.mxu0 0.0
        %765 = vmatprep.subr.mxu0 0.0
        %766 = vmatpush1.msra.mxu0 %v733
        %767 = vmatprep.subr.mxu0 0.0
        %768 = vmatpush2.msra.mxu0 0.0
        %769 = vmatprep.subr.mxu0 0.0
        %770 = vmatpush2.msra.mxu0 0.0
        %771 = vmatprep.subr.mxu0 0.0
        %772 = vmatpush2.msra.mxu0 0.0
        %773 = vmatprep.subr.mxu0 0.0
        %774 = vmatpush2.msra.mxu0 0.0
        %775 = vmatprep.subr.mxu0 0.0
        %776 = vmatpush2.msra.mxu0 0.0
        %777 = vmatprep.subr.mxu0 0.0
        %778 = vmatpush2.msra.mxu0 0.0
        %779 = vmatprep.subr.mxu0 0.0
        %780 = vmatpush2.msra.mxu0 0.0
        %781 = vmatprep.subr.mxu0 0.0
        %782 = vmatpush2.msra.mxu0 0.0
        %783 = vmatprep.subr.mxu0 0.0
        %784 = vmatpush2.msra.mxu0 0.0
        %785 = vmatprep.subr.mxu0 0.0
        %786 = vmatpush2.msra.mxu0 0.0
        %787 = vmatprep.subr.mxu0 0.0
        %788 = vmatpush2.msra.mxu0 0.0
        %789 = vmatprep.subr.mxu0 0.0
        %790 = vmatpush2.msra.mxu0 0.0
        %791 = vmatprep.subr.mxu0 0.0
        %792 = vmatpush2.msra.mxu0 0.0
        %793 = vmatprep.subr.mxu0 0.0
        %794 = vmatpush2.msra.mxu0 0.0
        %795 = vmatprep.subr.mxu0 0.0
        %796 = vmatpush2.msra.mxu0 0.0
        %797 = vmatprep.subr.mxu0 0.0
        %798 = vmatpush2.msra.mxu0 0.0
        %799 = vmatprep.mubr.f32.mxu0 0.0
        %800 = vmatmul.mubr.f32.gmra.mxu0 %v731
        %v801 = vpop.f32.mrf.mxu0
        %v802 = vadd.f32 0.0, %v801
        %v803 = vpop.f32.mrf.mxu0
        %804 = vdwg.mxu0
        %v805 = vadd.f32 %v719, %v802
        %v806 = vld [vmem:[%s639] sm:$0xff]
        %s807 = scalar_lea.vmem %s212, 56
        %v808 = vld [vmem:[%s807] sm:$0xff]
        %v810 = vcombine.high %v806, %v806
        %811 = vrot.lane.b32.xlu0 %v806, 127
        %v812 = vpop.permute.xlu0 %811
        %813 = vrot.lane.b32.xlu0 %v810, 127
        %v814 = vpop.permute.xlu0 %813
        %v815 = vsel %vm394, %v812, %v814
        %v817 = vsel %vm225, %v808, 0
        %v819 = vsel %vm229, %v815, 0
        %821 = vmatprep.subr.mxu0 0.0
        %822 = vmatpush1.msra.mxu0 0.0
        %823 = vmatprep.subr.mxu0 0.0
        %824 = vmatpush1.msra.mxu0 0.0
        %825 = vmatprep.subr.mxu0 0.0
        %826 = vmatpush1.msra.mxu0 0.0
        %827 = vmatprep.subr.mxu0 0.0
        %828 = vmatpush1.msra.mxu0 0.0
        %829 = vmatprep.subr.mxu0 0.0
        %830 = vmatpush1.msra.mxu0 0.0
        %831 = vmatprep.subr.mxu0 0.0
        %832 = vmatpush1.msra.mxu0 0.0
        %833 = vmatprep.subr.mxu0 0.0
        %834 = vmatpush1.msra.mxu0 0.0
        %835 = vmatprep.subr.mxu0 0.0
        %836 = vmatpush1.msra.mxu0 0.0
        %837 = vmatprep.subr.mxu0 0.0
        %838 = vmatpush1.msra.mxu0 0.0
        %839 = vmatprep.subr.mxu0 0.0
        %840 = vmatpush1.msra.mxu0 0.0
        %841 = vmatprep.subr.mxu0 0.0
        %842 = vmatpush1.msra.mxu0 0.0
        %843 = vmatprep.subr.mxu0 0.0
        %844 = vmatpush1.msra.mxu0 0.0
        %845 = vmatprep.subr.mxu0 0.0
        %846 = vmatpush1.msra.mxu0 0.0
        %847 = vmatprep.subr.mxu0 0.0
        %848 = vmatpush1.msra.mxu0 0.0
        %849 = vmatprep.subr.mxu0 0.0
        %850 = vmatpush1.msra.mxu0 0.0
        %851 = vmatprep.subr.mxu0 0.0
        %852 = vmatpush1.msra.mxu0 %v819
        %853 = vmatprep.subr.mxu0 0.0
        %854 = vmatpush2.msra.mxu0 0.0
        %855 = vmatprep.subr.mxu0 0.0
        %856 = vmatpush2.msra.mxu0 0.0
        %857 = vmatprep.subr.mxu0 0.0
        %858 = vmatpush2.msra.mxu0 0.0
        %859 = vmatprep.subr.mxu0 0.0
        %860 = vmatpush2.msra.mxu0 0.0
        %861 = vmatprep.subr.mxu0 0.0
        %862 = vmatpush2.msra.mxu0 0.0
        %863 = vmatprep.subr.mxu0 0.0
        %864 = vmatpush2.msra.mxu0 0.0
        %865 = vmatprep.subr.mxu0 0.0
        %866 = vmatpush2.msra.mxu0 0.0
        %867 = vmatprep.subr.mxu0 0.0
        %868 = vmatpush2.msra.mxu0 0.0
        %869 = vmatprep.subr.mxu0 0.0
        %870 = vmatpush2.msra.mxu0 0.0
        %871 = vmatprep.subr.mxu0 0.0
        %872 = vmatpush2.msra.mxu0 0.0
        %873 = vmatprep.subr.mxu0 0.0
        %874 = vmatpush2.msra.mxu0 0.0
        %875 = vmatprep.subr.mxu0 0.0
        %876 = vmatpush2.msra.mxu0 0.0
        %877 = vmatprep.subr.mxu0 0.0
        %878 = vmatpush2.msra.mxu0 0.0
        %879 = vmatprep.subr.mxu0 0.0
        %880 = vmatpush2.msra.mxu0 0.0
        %881 = vmatprep.subr.mxu0 0.0
        %882 = vmatpush2.msra.mxu0 0.0
        %883 = vmatprep.subr.mxu0 0.0
        %884 = vmatpush2.msra.mxu0 0.0
        %885 = vmatprep.mubr.f32.mxu0 0.0
        %886 = vmatmul.mubr.f32.gmra.mxu0 %v817
        %v887 = vpop.f32.mrf.mxu0
        %v888 = vadd.f32 0.0, %v887
        %v889 = vpop.f32.mrf.mxu0
        %890 = vdwg.mxu0
        %v891 = vadd.f32 %v805, %v888
        %v892 = vld [vmem:[%s208] sm:$0xff]
        %s893 = scalar_lea.vmem %s212, 64
        %v894 = vld [vmem:[%s893] sm:$0xff]
        %v896 = vcombine.high %v892, %v892
        %897 = vrot.lane.b32.xlu0 %v892, 119
        %v898 = vpop.permute.xlu0 %897
        %899 = vrot.lane.b32.xlu0 %v896, 119
        %v900 = vpop.permute.xlu0 %899
        %vm901 = vcmask 973824
        %v902 = vsel %vm901, %v898, %v900
        %v904 = vsel %vm225, %v894, 0
        %v906 = vsel %vm229, %v902, 0
        %908 = vmatprep.subr.mxu0 0.0
        %909 = vmatpush1.msra.mxu0 0.0
        %910 = vmatprep.subr.mxu0 0.0
        %911 = vmatpush1.msra.mxu0 0.0
        %912 = vmatprep.subr.mxu0 0.0
        %913 = vmatpush1.msra.mxu0 0.0
        %914 = vmatprep.subr.mxu0 0.0
        %915 = vmatpush1.msra.mxu0 0.0
        %916 = vmatprep.subr.mxu0 0.0
        %917 = vmatpush1.msra.mxu0 0.0
        %918 = vmatprep.subr.mxu0 0.0
        %919 = vmatpush1.msra.mxu0 0.0
        %920 = vmatprep.subr.mxu0 0.0
        %921 = vmatpush1.msra.mxu0 0.0
        %922 = vmatprep.subr.mxu0 0.0
        %923 = vmatpush1.msra.mxu0 0.0
        %924 = vmatprep.subr.mxu0 0.0
        %925 = vmatpush1.msra.mxu0 0.0
        %926 = vmatprep.subr.mxu0 0.0
        %927 = vmatpush1.msra.mxu0 0.0
        %928 = vmatprep.subr.mxu0 0.0
        %929 = vmatpush1.msra.mxu0 0.0
        %930 = vmatprep.subr.mxu0 0.0
        %931 = vmatpush1.msra.mxu0 0.0
        %932 = vmatprep.subr.mxu0 0.0
        %933 = vmatpush1.msra.mxu0 0.0
        %934 = vmatprep.subr.mxu0 0.0
        %935 = vmatpush1.msra.mxu0 0.0
        %936 = vmatprep.subr.mxu0 0.0
        %937 = vmatpush1.msra.mxu0 0.0
        %938 = vmatprep.subr.mxu0 0.0
        %939 = vmatpush1.msra.mxu0 %v906
        %940 = vmatprep.subr.mxu0 0.0
        %941 = vmatpush2.msra.mxu0 0.0
        %942 = vmatprep.subr.mxu0 0.0
        %943 = vmatpush2.msra.mxu0 0.0
        %944 = vmatprep.subr.mxu0 0.0
        %945 = vmatpush2.msra.mxu0 0.0
        %946 = vmatprep.subr.mxu0 0.0
        %947 = vmatpush2.msra.mxu0 0.0
        %948 = vmatprep.subr.mxu0 0.0
        %949 = vmatpush2.msra.mxu0 0.0
        %950 = vmatprep.subr.mxu0 0.0
        %951 = vmatpush2.msra.mxu0 0.0
        %952 = vmatprep.subr.mxu0 0.0
        %953 = vmatpush2.msra.mxu0 0.0
        %954 = vmatprep.subr.mxu0 0.0
        %955 = vmatpush2.msra.mxu0 0.0
        %956 = vmatprep.subr.mxu0 0.0
        %957 = vmatpush2.msra.mxu0 0.0
        %958 = vmatprep.subr.mxu0 0.0
        %959 = vmatpush2.msra.mxu0 0.0
        %960 = vmatprep.subr.mxu0 0.0
        %961 = vmatpush2.msra.mxu0 0.0
        %962 = vmatprep.subr.mxu0 0.0
        %963 = vmatpush2.msra.mxu0 0.0
        %964 = vmatprep.subr.mxu0 0.0
        %965 = vmatpush2.msra.mxu0 0.0
        %966 = vmatprep.subr.mxu0 0.0
        %967 = vmatpush2.msra.mxu0 0.0
        %968 = vmatprep.subr.mxu0 0.0
        %969 = vmatpush2.msra.mxu0 0.0
        %970 = vmatprep.subr.mxu0 0.0
        %971 = vmatpush2.msra.mxu0 0.0
        %972 = vmatprep.mubr.f32.mxu0 0.0
        %973 = vmatmul.mubr.f32.gmra.mxu0 %v904
        %v974 = vpop.f32.mrf.mxu0
        %v975 = vadd.f32 0.0, %v974
        %v976 = vpop.f32.mrf.mxu0
        %977 = vdwg.mxu0
        %v978 = vadd.f32 %v891, %v975
        %v979 = vld [vmem:[%s304] sm:$0xff]
        %s980 = scalar_lea.vmem %s212, 72
        %v981 = vld [vmem:[%s980] sm:$0xff]
        %v983 = vcombine.high %v979, %v979
        %984 = vrot.lane.b32.xlu0 %v979, 119
        %v985 = vpop.permute.xlu0 %984
        %986 = vrot.lane.b32.xlu0 %v983, 119
        %v987 = vpop.permute.xlu0 %986
        %v988 = vsel %vm901, %v985, %v987
        %v990 = vsel %vm225, %v981, 0
        %v992 = vsel %vm229, %v988, 0
        %994 = vmatprep.subr.mxu0 0.0
        %995 = vmatpush1.msra.mxu0 0.0
        %996 = vmatprep.subr.mxu0 0.0
        %997 = vmatpush1.msra.mxu0 0.0
        %998 = vmatprep.subr.mxu0 0.0
        %999 = vmatpush1.msra.mxu0 0.0
        %1000 = vmatprep.subr.mxu0 0.0
        %1001 = vmatpush1.msra.mxu0 0.0
        %1002 = vmatprep.subr.mxu0 0.0
        %1003 = vmatpush1.msra.mxu0 0.0
        %1004 = vmatprep.subr.mxu0 0.0
        %1005 = vmatpush1.msra.mxu0 0.0
        %1006 = vmatprep.subr.mxu0 0.0
        %1007 = vmatpush1.msra.mxu0 0.0
        %1008 = vmatprep.subr.mxu0 0.0
        %1009 = vmatpush1.msra.mxu0 0.0
        %1010 = vmatprep.subr.mxu0 0.0
        %1011 = vmatpush1.msra.mxu0 0.0
        %1012 = vmatprep.subr.mxu0 0.0
        %1013 = vmatpush1.msra.mxu0 0.0
        %1014 = vmatprep.subr.mxu0 0.0
        %1015 = vmatpush1.msra.mxu0 0.0
        %1016 = vmatprep.subr.mxu0 0.0
        %1017 = vmatpush1.msra.mxu0 0.0
        %1018 = vmatprep.subr.mxu0 0.0
        %1019 = vmatpush1.msra.mxu0 0.0
        %1020 = vmatprep.subr.mxu0 0.0
        %1021 = vmatpush1.msra.mxu0 0.0
        %1022 = vmatprep.subr.mxu0 0.0
        %1023 = vmatpush1.msra.mxu0 0.0
        %1024 = vmatprep.subr.mxu0 0.0
        %1025 = vmatpush1.msra.mxu0 %v992
        %1026 = vmatprep.subr.mxu0 0.0
        %1027 = vmatpush2.msra.mxu0 0.0
        %1028 = vmatprep.subr.mxu0 0.0
        %1029 = vmatpush2.msra.mxu0 0.0
        %1030 = vmatprep.subr.mxu0 0.0
        %1031 = vmatpush2.msra.mxu0 0.0
        %1032 = vmatprep.subr.mxu0 0.0
        %1033 = vmatpush2.msra.mxu0 0.0
        %1034 = vmatprep.subr.mxu0 0.0
        %1035 = vmatpush2.msra.mxu0 0.0
        %1036 = vmatprep.subr.mxu0 0.0
        %1037 = vmatpush2.msra.mxu0 0.0
        %1038 = vmatprep.subr.mxu0 0.0
        %1039 = vmatpush2.msra.mxu0 0.0
        %1040 = vmatprep.subr.mxu0 0.0
        %1041 = vmatpush2.msra.mxu0 0.0
        %1042 = vmatprep.subr.mxu0 0.0
        %1043 = vmatpush2.msra.mxu0 0.0
        %1044 = vmatprep.subr.mxu0 0.0
        %1045 = vmatpush2.msra.mxu0 0.0
        %1046 = vmatprep.subr.mxu0 0.0
        %1047 = vmatpush2.msra.mxu0 0.0
        %1048 = vmatprep.subr.mxu0 0.0
        %1049 = vmatpush2.msra.mxu0 0.0
        %1050 = vmatprep.subr.mxu0 0.0
        %1051 = vmatpush2.msra.mxu0 0.0
        %1052 = vmatprep.subr.mxu0 0.0
        %1053 = vmatpush2.msra.mxu0 0.0
        %1054 = vmatprep.subr.mxu0 0.0
        %1055 = vmatpush2.msra.mxu0 0.0
        %1056 = vmatprep.subr.mxu0 0.0
        %1057 = vmatpush2.msra.mxu0 0.0
        %1058 = vmatprep.mubr.f32.mxu0 0.0
        %1059 = vmatmul.mubr.f32.gmra.mxu0 %v990
        %v1060 = vpop.f32.mrf.mxu0
        %v1061 = vadd.f32 0.0, %v1060
        %v1062 = vpop.f32.mrf.mxu0
        %1063 = vdwg.mxu0
        %v1064 = vadd.f32 %v978, %v1061
        %v1065 = vld [vmem:[%s208] sm:$0xff]
        %s1066 = scalar_lea.vmem %s212, 80
        %v1067 = vld [vmem:[%s1066] sm:$0xff]
        %v1069 = vcombine.high %v1065, %v1065
        %1070 = vrot.lane.b32.xlu0 %v1065, 118
        %v1071 = vpop.permute.xlu0 %1070
        %1072 = vrot.lane.b32.xlu0 %v1069, 118
        %v1073 = vpop.permute.xlu0 %1072
        %vm1074 = vcmask 965632
        %v1075 = vsel %vm1074, %v1071, %v1073
        %v1077 = vsel %vm225, %v1067, 0
        %v1079 = vsel %vm229, %v1075, 0
        %1081 = vmatprep.subr.mxu0 0.0
        %1082 = vmatpush1.msra.mxu0 0.0
        %1083 = vmatprep.subr.mxu0 0.0
        %1084 = vmatpush1.msra.mxu0 0.0
        %1085 = vmatprep.subr.mxu0 0.0
        %1086 = vmatpush1.msra.mxu0 0.0
        %1087 = vmatprep.subr.mxu0 0.0
        %1088 = vmatpush1.msra.mxu0 0.0
        %1089 = vmatprep.subr.mxu0 0.0
        %1090 = vmatpush1.msra.mxu0 0.0
        %1091 = vmatprep.subr.mxu0 0.0
        %1092 = vmatpush1.msra.mxu0 0.0
        %1093 = vmatprep.subr.mxu0 0.0
        %1094 = vmatpush1.msra.mxu0 0.0
        %1095 = vmatprep.subr.mxu0 0.0
        %1096 = vmatpush1.msra.mxu0 0.0
        %1097 = vmatprep.subr.mxu0 0.0
        %1098 = vmatpush1.msra.mxu0 0.0
        %1099 = vmatprep.subr.mxu0 0.0
        %1100 = vmatpush1.msra.mxu0 0.0
        %1101 = vmatprep.subr.mxu0 0.0
        %1102 = vmatpush1.msra.mxu0 0.0
        %1103 = vmatprep.subr.mxu0 0.0
        %1104 = vmatpush1.msra.mxu0 0.0
        %1105 = vmatprep.subr.mxu0 0.0
        %1106 = vmatpush1.msra.mxu0 0.0
        %1107 = vmatprep.subr.mxu0 0.0
        %1108 = vmatpush1.msra.mxu0 0.0
        %1109 = vmatprep.subr.mxu0 0.0
        %1110 = vmatpush1.msra.mxu0 0.0
        %1111 = vmatprep.subr.mxu0 0.0
        %1112 = vmatpush1.msra.mxu0 %v1079
        %1113 = vmatprep.subr.mxu0 0.0
        %1114 = vmatpush2.msra.mxu0 0.0
        %1115 = vmatprep.subr.mxu0 0.0
        %1116 = vmatpush2.msra.mxu0 0.0
        %1117 = vmatprep.subr.mxu0 0.0
        %1118 = vmatpush2.msra.mxu0 0.0
        %1119 = vmatprep.subr.mxu0 0.0
        %1120 = vmatpush2.msra.mxu0 0.0
        %1121 = vmatprep.subr.mxu0 0.0
        %1122 = vmatpush2.msra.mxu0 0.0
        %1123 = vmatprep.subr.mxu0 0.0
        %1124 = vmatpush2.msra.mxu0 0.0
        %1125 = vmatprep.subr.mxu0 0.0
        %1126 = vmatpush2.msra.mxu0 0.0
        %1127 = vmatprep.subr.mxu0 0.0
        %1128 = vmatpush2.msra.mxu0 0.0
        %1129 = vmatprep.subr.mxu0 0.0
        %1130 = vmatpush2.msra.mxu0 0.0
        %1131 = vmatprep.subr.mxu0 0.0
        %1132 = vmatpush2.msra.mxu0 0.0
        %1133 = vmatprep.subr.mxu0 0.0
        %1134 = vmatpush2.msra.mxu0 0.0
        %1135 = vmatprep.subr.mxu0 0.0
        %1136 = vmatpush2.msra.mxu0 0.0
        %1137 = vmatprep.subr.mxu0 0.0
        %1138 = vmatpush2.msra.mxu0 0.0
        %1139 = vmatprep.subr.mxu0 0.0
        %1140 = vmatpush2.msra.mxu0 0.0
        %1141 = vmatprep.subr.mxu0 0.0
        %1142 = vmatpush2.msra.mxu0 0.0
        %1143 = vmatprep.subr.mxu0 0.0
        %1144 = vmatpush2.msra.mxu0 0.0
        %1145 = vmatprep.mubr.f32.mxu0 0.0
        %1146 = vmatmul.mubr.f32.gmra.mxu0 %v1077
        %v1147 = vpop.f32.mrf.mxu0
        %v1148 = vadd.f32 0.0, %v1147
        %v1149 = vpop.f32.mrf.mxu0
        %1150 = vdwg.mxu0
        %v1151 = vadd.f32 %v1064, %v1148
        %v1152 = vld [vmem:[%s304] sm:$0xff]
        %s1153 = scalar_lea.vmem %s212, 88
        %v1154 = vld [vmem:[%s1153] sm:$0xff]
        %v1156 = vcombine.high %v1152, %v1152
        %1157 = vrot.lane.b32.xlu0 %v1152, 118
        %v1158 = vpop.permute.xlu0 %1157
        %1159 = vrot.lane.b32.xlu0 %v1156, 118
        %v1160 = vpop.permute.xlu0 %1159
        %v1161 = vsel %vm1074, %v1158, %v1160
        %v1163 = vsel %vm225, %v1154, 0
        %v1165 = vsel %vm229, %v1161, 0
        %1167 = vmatprep.subr.mxu0 0.0
        %1168 = vmatpush1.msra.mxu0 0.0
        %1169 = vmatprep.subr.mxu0 0.0
        %1170 = vmatpush1.msra.mxu0 0.0
        %1171 = vmatprep.subr.mxu0 0.0
        %1172 = vmatpush1.msra.mxu0 0.0
        %1173 = vmatprep.subr.mxu0 0.0
        %1174 = vmatpush1.msra.mxu0 0.0
        %1175 = vmatprep.subr.mxu0 0.0
        %1176 = vmatpush1.msra.mxu0 0.0
        %1177 = vmatprep.subr.mxu0 0.0
        %1178 = vmatpush1.msra.mxu0 0.0
        %1179 = vmatprep.subr.mxu0 0.0
        %1180 = vmatpush1.msra.mxu0 0.0
        %1181 = vmatprep.subr.mxu0 0.0
        %1182 = vmatpush1.msra.mxu0 0.0
        %1183 = vmatprep.subr.mxu0 0.0
        %1184 = vmatpush1.msra.mxu0 0.0
        %1185 = vmatprep.subr.mxu0 0.0
        %1186 = vmatpush1.msra.mxu0 0.0
        %1187 = vmatprep.subr.mxu0 0.0
        %1188 = vmatpush1.msra.mxu0 0.0
        %1189 = vmatprep.subr.mxu0 0.0
        %1190 = vmatpush1.msra.mxu0 0.0
        %1191 = vmatprep.subr.mxu0 0.0
        %1192 = vmatpush1.msra.mxu0 0.0
        %1193 = vmatprep.subr.mxu0 0.0
        %1194 = vmatpush1.msra.mxu0 0.0
        %1195 = vmatprep.subr.mxu0 0.0
        %1196 = vmatpush1.msra.mxu0 0.0
        %1197 = vmatprep.subr.mxu0 0.0
        %1198 = vmatpush1.msra.mxu0 %v1165
        %1199 = vmatprep.subr.mxu0 0.0
        %1200 = vmatpush2.msra.mxu0 0.0
        %1201 = vmatprep.subr.mxu0 0.0
        %1202 = vmatpush2.msra.mxu0 0.0
        %1203 = vmatprep.subr.mxu0 0.0
        %1204 = vmatpush2.msra.mxu0 0.0
        %1205 = vmatprep.subr.mxu0 0.0
        %1206 = vmatpush2.msra.mxu0 0.0
        %1207 = vmatprep.subr.mxu0 0.0
        %1208 = vmatpush2.msra.mxu0 0.0
        %1209 = vmatprep.subr.mxu0 0.0
        %1210 = vmatpush2.msra.mxu0 0.0
        %1211 = vmatprep.subr.mxu0 0.0
        %1212 = vmatpush2.msra.mxu0 0.0
        %1213 = vmatprep.subr.mxu0 0.0
        %1214 = vmatpush2.msra.mxu0 0.0
        %1215 = vmatprep.subr.mxu0 0.0
        %1216 = vmatpush2.msra.mxu0 0.0
        %1217 = vmatprep.subr.mxu0 0.0
        %1218 = vmatpush2.msra.mxu0 0.0
        %1219 = vmatprep.subr.mxu0 0.0
        %1220 = vmatpush2.msra.mxu0 0.0
        %1221 = vmatprep.subr.mxu0 0.0
        %1222 = vmatpush2.msra.mxu0 0.0
        %1223 = vmatprep.subr.mxu0 0.0
        %1224 = vmatpush2.msra.mxu0 0.0
        %1225 = vmatprep.subr.mxu0 0.0
        %1226 = vmatpush2.msra.mxu0 0.0
        %1227 = vmatprep.subr.mxu0 0.0
        %1228 = vmatpush2.msra.mxu0 0.0
        %1229 = vmatprep.subr.mxu0 0.0
        %1230 = vmatpush2.msra.mxu0 0.0
        %1231 = vmatprep.mubr.f32.mxu0 0.0
        %1232 = vmatmul.mubr.f32.gmra.mxu0 %v1163
        %v1233 = vpop.f32.mrf.mxu0
        %v1234 = vadd.f32 0.0, %v1233
        %v1235 = vpop.f32.mrf.mxu0
        %1236 = vdwg.mxu0
        %v1237 = vadd.f32 %v1151, %v1234
        %v1238 = vld [vmem:[%s558] sm:$0xff]
        %s1239 = scalar_lea.vmem %s212, 96
        %v1240 = vld [vmem:[%s1239] sm:$0xff]
        %v1242 = vcombine.high %v1238, %v1238
        %1243 = vrot.lane.b32.xlu0 %v1238, 119
        %v1244 = vpop.permute.xlu0 %1243
        %1245 = vrot.lane.b32.xlu0 %v1242, 119
        %v1246 = vpop.permute.xlu0 %1245
        %v1247 = vsel %vm901, %v1244, %v1246
        %v1249 = vsel %vm225, %v1240, 0
        %v1251 = vsel %vm229, %v1247, 0
        %1253 = vmatprep.subr.mxu0 0.0
        %1254 = vmatpush1.msra.mxu0 0.0
        %1255 = vmatprep.subr.mxu0 0.0
        %1256 = vmatpush1.msra.mxu0 0.0
        %1257 = vmatprep.subr.mxu0 0.0
        %1258 = vmatpush1.msra.mxu0 0.0
        %1259 = vmatprep.subr.mxu0 0.0
        %1260 = vmatpush1.msra.mxu0 0.0
        %1261 = vmatprep.subr.mxu0 0.0
        %1262 = vmatpush1.msra.mxu0 0.0
        %1263 = vmatprep.subr.mxu0 0.0
        %1264 = vmatpush1.msra.mxu0 0.0
        %1265 = vmatprep.subr.mxu0 0.0
        %1266 = vmatpush1.msra.mxu0 0.0
        %1267 = vmatprep.subr.mxu0 0.0
        %1268 = vmatpush1.msra.mxu0 0.0
        %1269 = vmatprep.subr.mxu0 0.0
        %1270 = vmatpush1.msra.mxu0 0.0
        %1271 = vmatprep.subr.mxu0 0.0
        %1272 = vmatpush1.msra.mxu0 0.0
        %1273 = vmatprep.subr.mxu0 0.0
        %1274 = vmatpush1.msra.mxu0 0.0
        %1275 = vmatprep.subr.mxu0 0.0
        %1276 = vmatpush1.msra.mxu0 0.0
        %1277 = vmatprep.subr.mxu0 0.0
        %1278 = vmatpush1.msra.mxu0 0.0
        %1279 = vmatprep.subr.mxu0 0.0
        %1280 = vmatpush1.msra.mxu0 0.0
        %1281 = vmatprep.subr.mxu0 0.0
        %1282 = vmatpush1.msra.mxu0 0.0
        %1283 = vmatprep.subr.mxu0 0.0
        %1284 = vmatpush1.msra.mxu0 %v1251
        %1285 = vmatprep.subr.mxu0 0.0
        %1286 = vmatpush2.msra.mxu0 0.0
        %1287 = vmatprep.subr.mxu0 0.0
        %1288 = vmatpush2.msra.mxu0 0.0
        %1289 = vmatprep.subr.mxu0 0.0
        %1290 = vmatpush2.msra.mxu0 0.0
        %1291 = vmatprep.subr.mxu0 0.0
        %1292 = vmatpush2.msra.mxu0 0.0
        %1293 = vmatprep.subr.mxu0 0.0
        %1294 = vmatpush2.msra.mxu0 0.0
        %1295 = vmatprep.subr.mxu0 0.0
        %1296 = vmatpush2.msra.mxu0 0.0
        %1297 = vmatprep.subr.mxu0 0.0
        %1298 = vmatpush2.msra.mxu0 0.0
        %1299 = vmatprep.subr.mxu0 0.0
        %1300 = vmatpush2.msra.mxu0 0.0
        %1301 = vmatprep.subr.mxu0 0.0
        %1302 = vmatpush2.msra.mxu0 0.0
        %1303 = vmatprep.subr.mxu0 0.0
        %1304 = vmatpush2.msra.mxu0 0.0
        %1305 = vmatprep.subr.mxu0 0.0
        %1306 = vmatpush2.msra.mxu0 0.0
        %1307 = vmatprep.subr.mxu0 0.0
        %1308 = vmatpush2.msra.mxu0 0.0
        %1309 = vmatprep.subr.mxu0 0.0
        %1310 = vmatpush2.msra.mxu0 0.0
        %1311 = vmatprep.subr.mxu0 0.0
        %1312 = vmatpush2.msra.mxu0 0.0
        %1313 = vmatprep.subr.mxu0 0.0
        %1314 = vmatpush2.msra.mxu0 0.0
        %1315 = vmatprep.subr.mxu0 0.0
        %1316 = vmatpush2.msra.mxu0 0.0
        %1317 = vmatprep.mubr.f32.mxu0 0.0
        %1318 = vmatmul.mubr.f32.gmra.mxu0 %v1249
        %v1319 = vpop.f32.mrf.mxu0
        %v1320 = vadd.f32 0.0, %v1319
        %v1321 = vpop.f32.mrf.mxu0
        %1322 = vdwg.mxu0
        %v1323 = vadd.f32 %v1237, %v1320
        %v1324 = vld [vmem:[%s639] sm:$0xff]
        %s1325 = scalar_lea.vmem %s212, 104
        %v1326 = vld [vmem:[%s1325] sm:$0xff]
        %v1328 = vcombine.high %v1324, %v1324
        %1329 = vrot.lane.b32.xlu0 %v1324, 119
        %v1330 = vpop.permute.xlu0 %1329
        %1331 = vrot.lane.b32.xlu0 %v1328, 119
        %v1332 = vpop.permute.xlu0 %1331
        %v1333 = vsel %vm901, %v1330, %v1332
        %v1335 = vsel %vm225, %v1326, 0
        %v1337 = vsel %vm229, %v1333, 0
        %1339 = vmatprep.subr.mxu0 0.0
        %1340 = vmatpush1.msra.mxu0 0.0
        %1341 = vmatprep.subr.mxu0 0.0
        %1342 = vmatpush1.msra.mxu0 0.0
        %1343 = vmatprep.subr.mxu0 0.0
        %1344 = vmatpush1.msra.mxu0 0.0
        %1345 = vmatprep.subr.mxu0 0.0
        %1346 = vmatpush1.msra.mxu0 0.0
        %1347 = vmatprep.subr.mxu0 0.0
        %1348 = vmatpush1.msra.mxu0 0.0
        %1349 = vmatprep.subr.mxu0 0.0
        %1350 = vmatpush1.msra.mxu0 0.0
        %1351 = vmatprep.subr.mxu0 0.0
        %1352 = vmatpush1.msra.mxu0 0.0
        %1353 = vmatprep.subr.mxu0 0.0
        %1354 = vmatpush1.msra.mxu0 0.0
        %1355 = vmatprep.subr.mxu0 0.0
        %1356 = vmatpush1.msra.mxu0 0.0
        %1357 = vmatprep.subr.mxu0 0.0
        %1358 = vmatpush1.msra.mxu0 0.0
        %1359 = vmatprep.subr.mxu0 0.0
        %1360 = vmatpush1.msra.mxu0 0.0
        %1361 = vmatprep.subr.mxu0 0.0
        %1362 = vmatpush1.msra.mxu0 0.0
        %1363 = vmatprep.subr.mxu0 0.0
        %1364 = vmatpush1.msra.mxu0 0.0
        %1365 = vmatprep.subr.mxu0 0.0
        %1366 = vmatpush1.msra.mxu0 0.0
        %1367 = vmatprep.subr.mxu0 0.0
        %1368 = vmatpush1.msra.mxu0 0.0
        %1369 = vmatprep.subr.mxu0 0.0
        %1370 = vmatpush1.msra.mxu0 %v1337
        %1371 = vmatprep.subr.mxu0 0.0
        %1372 = vmatpush2.msra.mxu0 0.0
        %1373 = vmatprep.subr.mxu0 0.0
        %1374 = vmatpush2.msra.mxu0 0.0
        %1375 = vmatprep.subr.mxu0 0.0
        %1376 = vmatpush2.msra.mxu0 0.0
        %1377 = vmatprep.subr.mxu0 0.0
        %1378 = vmatpush2.msra.mxu0 0.0
        %1379 = vmatprep.subr.mxu0 0.0
        %1380 = vmatpush2.msra.mxu0 0.0
        %1381 = vmatprep.subr.mxu0 0.0
        %1382 = vmatpush2.msra.mxu0 0.0
        %1383 = vmatprep.subr.mxu0 0.0
        %1384 = vmatpush2.msra.mxu0 0.0
        %1385 = vmatprep.subr.mxu0 0.0
        %1386 = vmatpush2.msra.mxu0 0.0
        %1387 = vmatprep.subr.mxu0 0.0
        %1388 = vmatpush2.msra.mxu0 0.0
        %1389 = vmatprep.subr.mxu0 0.0
        %1390 = vmatpush2.msra.mxu0 0.0
        %1391 = vmatprep.subr.mxu0 0.0
        %1392 = vmatpush2.msra.mxu0 0.0
        %1393 = vmatprep.subr.mxu0 0.0
        %1394 = vmatpush2.msra.mxu0 0.0
        %1395 = vmatprep.subr.mxu0 0.0
        %1396 = vmatpush2.msra.mxu0 0.0
        %1397 = vmatprep.subr.mxu0 0.0
        %1398 = vmatpush2.msra.mxu0 0.0
        %1399 = vmatprep.subr.mxu0 0.0
        %1400 = vmatpush2.msra.mxu0 0.0
        %1401 = vmatprep.subr.mxu0 0.0
        %1402 = vmatpush2.msra.mxu0 0.0
        %1403 = vmatprep.mubr.f32.mxu0 0.0
        %1404 = vmatmul.mubr.f32.gmra.mxu0 %v1335
        %v1405 = vpop.f32.mrf.mxu0
        %v1406 = vadd.f32 0.0, %v1405
        %v1407 = vpop.f32.mrf.mxu0
        %1408 = vdwg.mxu0
        %v1409 = vadd.f32 %v1323, %v1406
        %v1410 = vld [vmem:[%s558] sm:$0xff]
        %s1411 = scalar_lea.vmem %s212, 112
        %v1412 = vld [vmem:[%s1411] sm:$0xff]
        %v1414 = vcombine.high %v1410, %v1410
        %1415 = vrot.lane.b32.xlu0 %v1410, 118
        %v1416 = vpop.permute.xlu0 %1415
        %1417 = vrot.lane.b32.xlu0 %v1414, 118
        %v1418 = vpop.permute.xlu0 %1417
        %v1419 = vsel %vm1074, %v1416, %v1418
        %v1421 = vsel %vm225, %v1412, 0
        %v1423 = vsel %vm229, %v1419, 0
        %1425 = vmatprep.subr.mxu0 0.0
        %1426 = vmatpush1.msra.mxu0 0.0
        %1427 = vmatprep.subr.mxu0 0.0
        %1428 = vmatpush1.msra.mxu0 0.0
        %1429 = vmatprep.subr.mxu0 0.0
        %1430 = vmatpush1.msra.mxu0 0.0
        %1431 = vmatprep.subr.mxu0 0.0
        %1432 = vmatpush1.msra.mxu0 0.0
        %1433 = vmatprep.subr.mxu0 0.0
        %1434 = vmatpush1.msra.mxu0 0.0
        %1435 = vmatprep.subr.mxu0 0.0
        %1436 = vmatpush1.msra.mxu0 0.0
        %1437 = vmatprep.subr.mxu0 0.0
        %1438 = vmatpush1.msra.mxu0 0.0
        %1439 = vmatprep.subr.mxu0 0.0
        %1440 = vmatpush1.msra.mxu0 0.0
        %1441 = vmatprep.subr.mxu0 0.0
        %1442 = vmatpush1.msra.mxu0 0.0
        %1443 = vmatprep.subr.mxu0 0.0
        %1444 = vmatpush1.msra.mxu0 0.0
        %1445 = vmatprep.subr.mxu0 0.0
        %1446 = vmatpush1.msra.mxu0 0.0
        %1447 = vmatprep.subr.mxu0 0.0
        %1448 = vmatpush1.msra.mxu0 0.0
        %1449 = vmatprep.subr.mxu0 0.0
        %1450 = vmatpush1.msra.mxu0 0.0
        %1451 = vmatprep.subr.mxu0 0.0
        %1452 = vmatpush1.msra.mxu0 0.0
        %1453 = vmatprep.subr.mxu0 0.0
        %1454 = vmatpush1.msra.mxu0 0.0
        %1455 = vmatprep.subr.mxu0 0.0
        %1456 = vmatpush1.msra.mxu0 %v1423
        %1457 = vmatprep.subr.mxu0 0.0
        %1458 = vmatpush2.msra.mxu0 0.0
        %1459 = vmatprep.subr.mxu0 0.0
        %1460 = vmatpush2.msra.mxu0 0.0
        %1461 = vmatprep.subr.mxu0 0.0
        %1462 = vmatpush2.msra.mxu0 0.0
        %1463 = vmatprep.subr.mxu0 0.0
        %1464 = vmatpush2.msra.mxu0 0.0
        %1465 = vmatprep.subr.mxu0 0.0
        %1466 = vmatpush2.msra.mxu0 0.0
        %1467 = vmatprep.subr.mxu0 0.0
        %1468 = vmatpush2.msra.mxu0 0.0
        %1469 = vmatprep.subr.mxu0 0.0
        %1470 = vmatpush2.msra.mxu0 0.0
        %1471 = vmatprep.subr.mxu0 0.0
        %1472 = vmatpush2.msra.mxu0 0.0
        %1473 = vmatprep.subr.mxu0 0.0
        %1474 = vmatpush2.msra.mxu0 0.0
        %1475 = vmatprep.subr.mxu0 0.0
        %1476 = vmatpush2.msra.mxu0 0.0
        %1477 = vmatprep.subr.mxu0 0.0
        %1478 = vmatpush2.msra.mxu0 0.0
        %1479 = vmatprep.subr.mxu0 0.0
        %1480 = vmatpush2.msra.mxu0 0.0
        %1481 = vmatprep.subr.mxu0 0.0
        %1482 = vmatpush2.msra.mxu0 0.0
        %1483 = vmatprep.subr.mxu0 0.0
        %1484 = vmatpush2.msra.mxu0 0.0
        %1485 = vmatprep.subr.mxu0 0.0
        %1486 = vmatpush2.msra.mxu0 0.0
        %1487 = vmatprep.subr.mxu0 0.0
        %1488 = vmatpush2.msra.mxu0 0.0
        %1489 = vmatprep.mubr.f32.mxu0 0.0
        %1490 = vmatmul.mubr.f32.gmra.mxu0 %v1421
        %v1491 = vpop.f32.mrf.mxu0
        %v1492 = vadd.f32 0.0, %v1491
        %v1493 = vpop.f32.mrf.mxu0
        %1494 = vdwg.mxu0
        %v1495 = vadd.f32 %v1409, %v1492
        %v1496 = vld [vmem:[%s639] sm:$0xff]
        %s1497 = scalar_lea.vmem %s212, 120
        %v1498 = vld [vmem:[%s1497] sm:$0xff]
        %v1500 = vcombine.high %v1496, %v1496
        %1501 = vrot.lane.b32.xlu0 %v1496, 118
        %v1502 = vpop.permute.xlu0 %1501
        %1503 = vrot.lane.b32.xlu0 %v1500, 118
        %v1504 = vpop.permute.xlu0 %1503
        %v1505 = vsel %vm1074, %v1502, %v1504
        %v1507 = vsel %vm225, %v1498, 0
        %v1509 = vsel %vm229, %v1505, 0
        %1511 = vmatprep.subr.mxu0 0.0
        %1512 = vmatpush1.msra.mxu0 0.0
        %1513 = vmatprep.subr.mxu0 0.0
        %1514 = vmatpush1.msra.mxu0 0.0
        %1515 = vmatprep.subr.mxu0 0.0
        %1516 = vmatpush1.msra.mxu0 0.0
        %1517 = vmatprep.subr.mxu0 0.0
        %1518 = vmatpush1.msra.mxu0 0.0
        %1519 = vmatprep.subr.mxu0 0.0
        %1520 = vmatpush1.msra.mxu0 0.0
        %1521 = vmatprep.subr.mxu0 0.0
        %1522 = vmatpush1.msra.mxu0 0.0
        %1523 = vmatprep.subr.mxu0 0.0
        %1524 = vmatpush1.msra.mxu0 0.0
        %1525 = vmatprep.subr.mxu0 0.0
        %1526 = vmatpush1.msra.mxu0 0.0
        %1527 = vmatprep.subr.mxu0 0.0
        %1528 = vmatpush1.msra.mxu0 0.0
        %1529 = vmatprep.subr.mxu0 0.0
        %1530 = vmatpush1.msra.mxu0 0.0
        %1531 = vmatprep.subr.mxu0 0.0
        %1532 = vmatpush1.msra.mxu0 0.0
        %1533 = vmatprep.subr.mxu0 0.0
        %1534 = vmatpush1.msra.mxu0 0.0
        %1535 = vmatprep.subr.mxu0 0.0
        %1536 = vmatpush1.msra.mxu0 0.0
        %1537 = vmatprep.subr.mxu0 0.0
        %1538 = vmatpush1.msra.mxu0 0.0
        %1539 = vmatprep.subr.mxu0 0.0
        %1540 = vmatpush1.msra.mxu0 0.0
        %1541 = vmatprep.subr.mxu0 0.0
        %1542 = vmatpush1.msra.mxu0 %v1509
        %1543 = vmatprep.subr.mxu0 0.0
        %1544 = vmatpush2.msra.mxu0 0.0
        %1545 = vmatprep.subr.mxu0 0.0
        %1546 = vmatpush2.msra.mxu0 0.0
        %1547 = vmatprep.subr.mxu0 0.0
        %1548 = vmatpush2.msra.mxu0 0.0
        %1549 = vmatprep.subr.mxu0 0.0
        %1550 = vmatpush2.msra.mxu0 0.0
        %1551 = vmatprep.subr.mxu0 0.0
        %1552 = vmatpush2.msra.mxu0 0.0
        %1553 = vmatprep.subr.mxu0 0.0
        %1554 = vmatpush2.msra.mxu0 0.0
        %1555 = vmatprep.subr.mxu0 0.0
        %1556 = vmatpush2.msra.mxu0 0.0
        %1557 = vmatprep.subr.mxu0 0.0
        %1558 = vmatpush2.msra.mxu0 0.0
        %1559 = vmatprep.subr.mxu0 0.0
        %1560 = vmatpush2.msra.mxu0 0.0
        %1561 = vmatprep.subr.mxu0 0.0
        %1562 = vmatpush2.msra.mxu0 0.0
        %1563 = vmatprep.subr.mxu0 0.0
        %1564 = vmatpush2.msra.mxu0 0.0
        %1565 = vmatprep.subr.mxu0 0.0
        %1566 = vmatpush2.msra.mxu0 0.0
        %1567 = vmatprep.subr.mxu0 0.0
        %1568 = vmatpush2.msra.mxu0 0.0
        %1569 = vmatprep.subr.mxu0 0.0
        %1570 = vmatpush2.msra.mxu0 0.0
        %1571 = vmatprep.subr.mxu0 0.0
        %1572 = vmatpush2.msra.mxu0 0.0
        %1573 = vmatprep.subr.mxu0 0.0
        %1574 = vmatpush2.msra.mxu0 0.0
        %1575 = vmatprep.mubr.f32.mxu0 0.0
        %1576 = vmatmul.mubr.f32.gmra.mxu0 %v1507
        %v1577 = vpop.f32.mrf.mxu0
        %v1578 = vadd.f32 0.0, %v1577
        %v1579 = vpop.f32.mrf.mxu0
        %1580 = vdwg.mxu0
        %v1581 = vadd.f32 %v1495, %v1578
        %1582 = vst [vmem:[%s203] sm:$0xff] %v1581
        %s1583 = sand.u32 %s117, 1
        %s1584 = scalar_lea.sflag [#allocation3], %s1583
        %s1585 = sand.u32 %s117, 1
        %s1586 = smul.addr %s1585, 8
        %s1587 = scalar_lea.vmem [#allocation2], %s1586
        // Predicated region
        $region33: #{tpu_custom_call.1} parent=31 // pred_check
          %p1588 = pneg %p127
        $region34: #{tpu_custom_call.1} parent=31 // pred_check_branch
          %1590 = sbr.rel (%p1588) target = $region36
        $region35: #{tpu_custom_call.1} parent=31 // pred_region
          %s1592 = ssub.s32 128, 128
          %1593 = vsyncadd %s1584, %s1592
          %s1594 = sadd.s32 %s22, %s21
          %s1595 = smul.addr %s1594, 128
          %s1596 = scalar_lea.hbm %s3, %s1595
          %s1598 = sshll.u32 %s1587, 4
          %s1599 = int_to_ptr.vmem [resolvable:$true] %s1598
          %1601 = dma.vmem_to_hbm [thread:$0]  %s1599, 128, %s1596, %s1584
        $region36: #{tpu_custom_call.1} parent=31 // pred_fallthru
          _
      $region32: #{tpu_custom_call.1} parent=5 // pred_fallthru
        _
      %p1602 = scmp.le.s32.totalorder 2, %s12
      // Predicated region
      $region37: #{tpu_custom_call.1} parent=5 // pred_check
        %p1603 = pneg %p1602
      $region38: #{tpu_custom_call.1} parent=5 // pred_check_branch
        %1605 = sbr.rel (%p1603) target = $region40
      $region39: #{tpu_custom_call.1} parent=5 // pred_region
        %s1606 = ssub.s32 %s12, 2
        // Predicated region
        $region41: #{tpu_custom_call.1} parent=39 // pred_check
          %p1607 = pneg %p133
        $region42: #{tpu_custom_call.1} parent=39 // pred_check_branch
          %1609 = sbr.rel (%p1607) target = $region44
        $region43: #{tpu_custom_call.1} parent=39 // pred_region
          %s1610 = sand.u32 %s118, 1
          %s1611 = scalar_lea.sflag [#allocation3], %s1610
          %s1612 = sand.u32 %s118, 1
          %s1613 = smul.addr %s1612, 8
          %s1614 = scalar_lea.vmem [#allocation2], %s1613
          %1615 = dma.done %s1611, 128
        $region44: #{tpu_custom_call.1} parent=39 // pred_fallthru
          _
      $region40: #{tpu_custom_call.1} parent=5 // pred_fallthru
        _
    $region6: #{tpu_custom_call.1} parent=1 // loop_footer
      %s16 = sadd.s32 1, %s12
    $region7: #{tpu_custom_call.1} parent=1 // loop_footer_branch
      %11 = sbr.rel target = $region3
    $region8: #{tpu_custom_call.1} parent=1 // loop_exit
      _
    %1616 = vsyncpa [#allocation3], 1
    %s1617 = scalar_lea.sflag [#allocation3], 1
    %1618 = vsyncpa %s1617, 1

</llo_original>
